<compile_context>
chip_gen: v7x
topology: tpu7x:2x2x1
jax: 0.10.0
libtpu: 0.0.40
codegen_flags: <defaults>
</compile_context>

<pallas_src>
import functools
import math

import jax
import jax.numpy as jnp
import numpy as np
from jax import lax
from jax.experimental import pallas as pl
from jax.experimental.pallas import tpu as pltpu


def _mha_kernel(q_ref, k_ref, v_ref, bias_ref,
                wq_ref, wk_ref, wv_ref, wfc_ref, gamma_ref, beta_ref,
                out_ref, attn_ref, ctx_ref,
                *, n_heads, d_k, d_v, eps):
    x_q = q_ref[0]                                 # (bq, D)
    x_k = k_ref[0]                                 # (Sk, D)
    x_v = v_ref[0]                                 # (Sk, D)
    bias = bias_ref[0].astype(jnp.float32)         # (bq, Sk), -1e9 where masked

    # Fused full-width projections: one MXU matmul each.
    # wq_ref is pre-scaled by 1/sqrt(d_k) in the wrapper.
    qh_all = jnp.dot(x_q, wq_ref[...], preferred_element_type=jnp.float32)  # (bq, H*d_k)
    kh_all = jnp.dot(x_k, wk_ref[...], preferred_element_type=jnp.float32)  # (Sk, H*d_k)
    vh_all = jnp.dot(x_v, wv_ref[...], preferred_element_type=jnp.float32)  # (Sk, H*d_v)

    # Small fixed head count -> static unroll keeps the LLO scheduler happy.
    # TODO(synk): switch to lax.fori_loop (or a head grid axis) for >=16 heads.
    for h in range(n_heads):
        qh = qh_all[:, h * d_k:(h + 1) * d_k]      # (bq, d_k)
        kh = kh_all[:, h * d_k:(h + 1) * d_k]      # (Sk, d_k)
        vh = vh_all[:, h * d_v:(h + 1) * d_v]      # (Sk, d_v)

        # scores = qh @ kh^T (scale already folded into Wq) + additive mask bias
        scores = lax.dot_general(qh, kh, (((1,), (1,)), ((), ())),
                                 preferred_element_type=jnp.float32) + bias

        # softmax along keys; reciprocal goes to the EUP slot.
        m = jnp.max(scores, axis=-1, keepdims=True)
        e = jnp.exp(scores - m)
        p = e * pl.reciprocal(jnp.sum(e, axis=-1, keepdims=True), approx=True)
        attn_ref[0, h] = p.astype(attn_ref.dtype)

        ctx_ref[:, h * d_v:(h + 1) * d_v] = jnp.dot(
            p, vh, preferred_element_type=jnp.float32)

    # Single fused output projection over the concatenated heads.
    out_proj = jnp.dot(ctx_ref[...].astype(wfc_ref.dtype), wfc_ref[...],
                       preferred_element_type=jnp.float32)       # (bq, D)

    # Residual + LayerNorm over d_model (biased variance, like nn.LayerNorm).
    y = out_proj + x_q.astype(jnp.float32)
    mean = jnp.mean(y, axis=-1, keepdims=True)
    var = jnp.mean((y - mean) ** 2, axis=-1, keepdims=True)
    norm = (y - mean) * lax.rsqrt(var + eps)
    out_ref[0] = (norm * gamma_ref[...].astype(jnp.float32)
                  + beta_ref[...].astype(jnp.float32)).astype(out_ref.dtype)


def _pick_q_block(sq, target=256):
    """Largest query tile <= target that divides Sq (multiple of 8 if tiled)."""
    if sq <= target:
        return sq
    for b in range(target, 7, -1):
        if sq % b == 0 and b % 8 == 0:
            return b
    return sq


def multi_head_attention(q, k, v, attention_mask, params,
                         *, n_heads, d_k, d_v, eps=1e-5):
    B, Sq, D = q.shape
    Sk = k.shape[1]
    wq, wk, wv, wfc, gamma, beta = params

    # Fold 1/sqrt(d_k) into Wq once at trace time.
    wq_scaled = (wq * (1.0 / math.sqrt(d_k))).astype(wq.dtype)
    gamma2 = gamma.reshape(1, D)
    beta2 = beta.reshape(1, D)

    # Additive mask bias precomputed once in HBM (nonzero == masked).
    bias = jnp.where(attention_mask != 0, jnp.float32(-1e9),
                     jnp.float32(0.0)).astype(q.dtype)

    bq = _pick_q_block(Sq)
    n_q_tiles = Sq // bq

    kernel = functools.partial(_mha_kernel, n_heads=n_heads, d_k=d_k,
                               d_v=d_v, eps=eps)

    out, attn = pl.pallas_call(
        kernel,
        out_shape=(jax.ShapeDtypeStruct((B, Sq, D), q.dtype),
                   jax.ShapeDtypeStruct((B, n_heads, Sq, Sk), q.dtype)),
        grid_spec=pltpu.PrefetchScalarGridSpec(
            num_scalar_prefetch=0,
            grid=(B, n_q_tiles),
            in_specs=[
                pl.BlockSpec((1, bq, D), lambda b, qi: (b, qi, 0)),
                pl.BlockSpec((1, Sk, D), lambda b, qi: (b, 0, 0)),
                pl.BlockSpec((1, Sk, D), lambda b, qi: (b, 0, 0)),
                pl.BlockSpec((1, bq, Sk), lambda b, qi: (b, qi, 0)),
                pl.BlockSpec((D, n_heads * d_k), lambda b, qi: (0, 0)),
                pl.BlockSpec((D, n_heads * d_k), lambda b, qi: (0, 0)),
                pl.BlockSpec((D, n_heads * d_v), lambda b, qi: (0, 0)),
                pl.BlockSpec((n_heads * d_v, D), lambda b, qi: (0, 0)),
                pl.BlockSpec((1, D), lambda b, qi: (0, 0)),
                pl.BlockSpec((1, D), lambda b, qi: (0, 0)),
            ],
            out_specs=[
                pl.BlockSpec((1, bq, D), lambda b, qi: (b, qi, 0)),
                pl.BlockSpec((1, n_heads, bq, Sk), lambda b, qi: (b, 0, qi, 0)),
            ],
            scratch_shapes=[pltpu.VMEM((bq, n_heads * d_v), jnp.float32)],
        ),
        compiler_params=pltpu.CompilerParams(
            dimension_semantics=("parallel", "parallel"),
            vmem_limit_bytes=32 * 1024 * 1024),
    )(q, k, v, bias, wq_scaled, wk, wv, wfc, gamma2, beta2)
    return out, attn


def _reference(q, k, v, mask, params, *, n_heads, d_k, d_v, eps=1e-5):
    """Pure-JAX reference mirroring the PyTorch forward."""
    wq, wk, wv, wfc, gamma, beta = params
    B, Sq, D = q.shape
    qp = (q @ wq).reshape(B, Sq, n_heads, d_k).transpose(0, 2, 1, 3)
    kp = (k @ wk).reshape(B, -1, n_heads, d_k).transpose(0, 2, 1, 3)
    vp = (v @ wv).reshape(B, -1, n_heads, d_v).transpose(0, 2, 1, 3)
    scores = jnp.einsum("bhqd,bhkd->bhqk", qp, kp) / np.sqrt(d_k)
    scores = jnp.where(mask[:, None, :, :] != 0.0, -1e9, scores)
    attn = jax.nn.softmax(scores, axis=-1)
    ctx = jnp.einsum("bhqk,bhkd->bhqd", attn, vp)
    ctx = ctx.transpose(0, 2, 1, 3).reshape(B, Sq, n_heads * d_v)
    out = ctx @ wfc
    y = out + q
    mean = jnp.mean(y, axis=-1, keepdims=True)
    var = jnp.mean((y - mean) ** 2, axis=-1, keepdims=True)
    return (y - mean) / jnp.sqrt(var + eps) * gamma + beta, attn


if __name__ == "__main__":
    d_model, n_heads, d_k, d_v = 32, 4, 8, 8
    batch, seq = 2, 8

    key = jax.random.PRNGKey(0)
    k0, k1, k2, k3, k4, k5, k6, k7 = jax.random.split(key, 8)

    # Parameters match nn.Linear(..., bias=False), stored as [in, out] since
    # the kernel computes x @ W.
    wq = 0.1 * jax.random.normal(k0, (d_model, n_heads * d_k), jnp.float32)
    wk = 0.1 * jax.random.normal(k1, (d_model, n_heads * d_k), jnp.float32)
    wv = 0.1 * jax.random.normal(k2, (d_model, n_heads * d_v), jnp.float32)
    wfc = 0.1 * jax.random.normal(k3, (n_heads * d_v, d_model), jnp.float32)
    gamma = jnp.ones((d_model,), jnp.float32)   # nn.LayerNorm default init
    beta = jnp.zeros((d_model,), jnp.float32)
    params = (wq, wk, wv, wfc, gamma, beta)

    q = jax.random.normal(k4, (batch, seq, d_model), jnp.float32)
    k = jax.random.normal(k5, (batch, seq, d_model), jnp.float32)
    v = jax.random.normal(k6, (batch, seq, d_model), jnp.float32)

    # Padding-style mask: nonzero == masked. Mask last 2 key positions of batch 1.
    mask = jnp.zeros((batch, seq, seq), jnp.float32)
    mask = mask.at[1, :, seq - 2:].set(1.0)

    out, attn = multi_head_attention(q, k, v, mask, params,
                                     n_heads=n_heads, d_k=d_k, d_v=d_v)
    jax.block_until_ready((out, attn))

    out_ref, attn_ref = _reference(q, k, v, mask, params,
                                   n_heads=n_heads, d_k=d_k, d_v=d_v)
    # Tolerances cover the approximate (EUP) reciprocal used in the softmax.
    np.testing.assert_allclose(np.asarray(out), np.asarray(out_ref),
                               rtol=1e-2, atol=1e-2)
    np.testing.assert_allclose(np.asarray(attn), np.asarray(attn_ref),
                               rtol=1e-2, atol=1e-2)

    print("KERNEL_OK")
</pallas_src>

<mosaic_0001>
module attributes {stable_mosaic.version = 11 : i64} {
  func.func @_mha_kernel(%arg0: i32, %arg1: i32, %arg2: memref<1x8x32xf32, #tpu.memory_space<vmem>>, %arg3: memref<1x8x32xf32, #tpu.memory_space<vmem>>, %arg4: memref<1x8x32xf32, #tpu.memory_space<vmem>>, %arg5: memref<1x8x8xf32, #tpu.memory_space<vmem>>, %arg6: memref<32x32xf32, #tpu.memory_space<vmem>>, %arg7: memref<32x32xf32, #tpu.memory_space<vmem>>, %arg8: memref<32x32xf32, #tpu.memory_space<vmem>>, %arg9: memref<32x32xf32, #tpu.memory_space<vmem>>, %arg10: memref<1x32xf32, #tpu.memory_space<vmem>>, %arg11: memref<1x32xf32, #tpu.memory_space<vmem>>, %arg12: memref<1x8x32xf32, #tpu.memory_space<vmem>>, %arg13: memref<1x4x8x8xf32, #tpu.memory_space<vmem>>, %arg14: memref<8x32xf32, #tpu.memory_space<vmem>>) attributes {dimension_semantics = [#tpu.dimension_semantics<parallel>, #tpu.dimension_semantics<parallel>], iteration_bounds = array<i64: 2, 1>, scalar_prefetch = 0 : i64, scratch_operands = 1 : i64, tpu.core_type = #tpu.core_type<tc>, window_params = [{transform_indices = @transform_0, window_bounds = array<i64: 1, 8, 32>}, {transform_indices = @transform_1, window_bounds = array<i64: 1, 8, 32>}, {transform_indices = @transform_2, window_bounds = array<i64: 1, 8, 32>}, {transform_indices = @transform_3, window_bounds = array<i64: 1, 8, 8>}, {pipeline_mode = #tpu.pipeline_mode<synchronous>, transform_indices = @transform_4, window_bounds = array<i64: 32, 32>}, {pipeline_mode = #tpu.pipeline_mode<synchronous>, transform_indices = @transform_5, window_bounds = array<i64: 32, 32>}, {pipeline_mode = #tpu.pipeline_mode<synchronous>, transform_indices = @transform_6, window_bounds = array<i64: 32, 32>}, {pipeline_mode = #tpu.pipeline_mode<synchronous>, transform_indices = @transform_7, window_bounds = array<i64: 32, 32>}, {pipeline_mode = #tpu.pipeline_mode<synchronous>, transform_indices = @transform_8, window_bounds = array<i64: 1, 32>}, {pipeline_mode = #tpu.pipeline_mode<synchronous>, transform_indices = @transform_9, window_bounds = array<i64: 1, 32>}, {transform_indices = @transform_10, window_bounds = array<i64: 1, 8, 32>}, {transform_indices = @transform_11, window_bounds = array<i64: 1, 4, 8, 8>}]} {
    %c0 = arith.constant 0 : index
    %c0_0 = arith.constant 0 : index
    %c0_1 = arith.constant 0 : index
    %0 = vector.load %arg2[%c0, %c0_0, %c0_1] : memref<1x8x32xf32, #tpu.memory_space<vmem>>, vector<1x8x32xf32>
    %1 = vector.shape_cast %0 : vector<1x8x32xf32> to vector<8x32xf32>
    %c0_2 = arith.constant 0 : index
    %c0_3 = arith.constant 0 : index
    %c0_4 = arith.constant 0 : index
    %2 = vector.load %arg3[%c0_2, %c0_3, %c0_4] : memref<1x8x32xf32, #tpu.memory_space<vmem>>, vector<1x8x32xf32>
    %3 = vector.shape_cast %2 : vector<1x8x32xf32> to vector<8x32xf32>
    %c0_5 = arith.constant 0 : index
    %c0_6 = arith.constant 0 : index
    %c0_7 = arith.constant 0 : index
    %4 = vector.load %arg4[%c0_5, %c0_6, %c0_7] : memref<1x8x32xf32, #tpu.memory_space<vmem>>, vector<1x8x32xf32>
    %5 = vector.shape_cast %4 : vector<1x8x32xf32> to vector<8x32xf32>
    %c0_8 = arith.constant 0 : index
    %c0_9 = arith.constant 0 : index
    %c0_10 = arith.constant 0 : index
    %6 = vector.load %arg5[%c0_8, %c0_9, %c0_10] : memref<1x8x8xf32, #tpu.memory_space<vmem>>, vector<1x8x8xf32>
    %7 = vector.shape_cast %6 : vector<1x8x8xf32> to vector<8x8xf32>
    %c0_11 = arith.constant 0 : index
    %c0_12 = arith.constant 0 : index
    %8 = vector.load %arg6[%c0_11, %c0_12] : memref<32x32xf32, #tpu.memory_space<vmem>>, vector<32x32xf32>
    %cst = arith.constant dense<0.000000e+00> : vector<8x32xf32>
    %9 = tpu.matmul %1, %8, %cst {dimension_numbers = #tpu.dot_dimension_numbers<[1], [0], [0], [1], [0, 0, 1, 1], [], []>} : vector<8x32xf32>, vector<32x32xf32>, vector<8x32xf32> -> vector<8x32xf32>
    %c0_13 = arith.constant 0 : index
    %c0_14 = arith.constant 0 : index
    %10 = vector.load %arg7[%c0_13, %c0_14] : memref<32x32xf32, #tpu.memory_space<vmem>>, vector<32x32xf32>
    %cst_15 = arith.constant dense<0.000000e+00> : vector<8x32xf32>
    %11 = tpu.matmul %3, %10, %cst_15 {dimension_numbers = #tpu.dot_dimension_numbers<[1], [0], [0], [1], [0, 0, 1, 1], [], []>} : vector<8x32xf32>, vector<32x32xf32>, vector<8x32xf32> -> vector<8x32xf32>
    %c0_16 = arith.constant 0 : index
    %c0_17 = arith.constant 0 : index
    %12 = vector.load %arg8[%c0_16, %c0_17] : memref<32x32xf32, #tpu.memory_space<vmem>>, vector<32x32xf32>
    %cst_18 = arith.constant dense<0.000000e+00> : vector<8x32xf32>
    %13 = tpu.matmul %5, %12, %cst_18 {dimension_numbers = #tpu.dot_dimension_numbers<[1], [0], [0], [1], [0, 0, 1, 1], [], []>} : vector<8x32xf32>, vector<32x32xf32>, vector<8x32xf32> -> vector<8x32xf32>
    %14 = vector.extract_strided_slice %9 {offsets = [0, 0], sizes = [8, 8], strides = [1, 1]} : vector<8x32xf32> to vector<8x8xf32>
    %15 = vector.extract_strided_slice %11 {offsets = [0, 0], sizes = [8, 8], strides = [1, 1]} : vector<8x32xf32> to vector<8x8xf32>
    %16 = vector.extract_strided_slice %13 {offsets = [0, 0], sizes = [8, 8], strides = [1, 1]} : vector<8x32xf32> to vector<8x8xf32>
    %cst_19 = arith.constant dense<0.000000e+00> : vector<8x8xf32>
    %17 = tpu.matmul %14, %15, %cst_19 {dimension_numbers = #tpu.dot_dimension_numbers<[1], [1], [0], [0], [0, 0, 1, 0], [], []>} : vector<8x8xf32>, vector<8x8xf32>, vector<8x8xf32> -> vector<8x8xf32>
    %18 = arith.addf %17, %7 : vector<8x8xf32>
    %cst_20 = arith.constant dense<0xFF800000> : vector<8xf32>
    %19 = vector.multi_reduction <maximumf>, %18, %cst_20 [1] : vector<8x8xf32> to vector<8xf32>
    %20 = vector.shape_cast %19 : vector<8xf32> to vector<8x1xf32>
    %21 = vector.broadcast %20 : vector<8x1xf32> to vector<8x8xf32>
    %22 = arith.subf %18, %21 : vector<8x8xf32>
    %23 = math.exp %22 : vector<8x8xf32>
    %cst_21 = arith.constant dense<0.000000e+00> : vector<8xf32>
    %24 = vector.multi_reduction <add>, %23, %cst_21 [1] : vector<8x8xf32> to vector<8xf32>
    %25 = vector.shape_cast %24 : vector<8xf32> to vector<8x1xf32>
    %26 = tpu.reciprocal %25 {approx = true} : vector<8x1xf32> -> vector<8x1xf32>
    %27 = vector.broadcast %26 : vector<8x1xf32> to vector<8x8xf32>
    %28 = arith.mulf %23, %27 : vector<8x8xf32>
    %c0_22 = arith.constant 0 : index
    %c0_23 = arith.constant 0 : index
    %c0_24 = arith.constant 0 : index
    %c0_25 = arith.constant 0 : index
    %29 = vector.load %arg13[%c0_22, %c0_23, %c0_24, %c0_25] : memref<1x4x8x8xf32, #tpu.memory_space<vmem>>, vector<1x1x8x8xf32>
    %30 = vector.shape_cast %29 : vector<1x1x8x8xf32> to vector<8x8xf32>
    %31 = vector.shape_cast %28 : vector<8x8xf32> to vector<1x1x8x8xf32>
    tpu.vector_store %arg13[%c0_22, %c0_23, %c0_24, %c0_25], %31 {strides = array<i32>} : memref<1x4x8x8xf32, #tpu.memory_space<vmem>>, vector<1x1x8x8xf32>,
    %cst_26 = arith.constant dense<0.000000e+00> : vector<8x8xf32>
    %32 = tpu.matmul %28, %16, %cst_26 {dimension_numbers = #tpu.dot_dimension_numbers<[1], [0], [0], [1], [0, 0, 1, 1], [], []>} : vector<8x8xf32>, vector<8x8xf32>, vector<8x8xf32> -> vector<8x8xf32>
    %c0_27 = arith.constant 0 : index
    %c0_28 = arith.constant 0 : index
    %33 = vector.load %arg14[%c0_27, %c0_28] : memref<8x32xf32, #tpu.memory_space<vmem>>, vector<8x8xf32>
    tpu.vector_store %arg14[%c0_27, %c0_28], %32 {strides = array<i32>} : memref<8x32xf32, #tpu.memory_space<vmem>>, vector<8x8xf32>,
    %34 = vector.extract_strided_slice %9 {offsets = [0, 8], sizes = [8, 8], strides = [1, 1]} : vector<8x32xf32> to vector<8x8xf32>
    %35 = vector.extract_strided_slice %11 {offsets = [0, 8], sizes = [8, 8], strides = [1, 1]} : vector<8x32xf32> to vector<8x8xf32>
    %36 = vector.extract_strided_slice %13 {offsets = [0, 8], sizes = [8, 8], strides = [1, 1]} : vector<8x32xf32> to vector<8x8xf32>
    %cst_29 = arith.constant dense<0.000000e+00> : vector<8x8xf32>
    %37 = tpu.matmul %34, %35, %cst_29 {dimension_numbers = #tpu.dot_dimension_numbers<[1], [1], [0], [0], [0, 0, 1, 0], [], []>} : vector<8x8xf32>, vector<8x8xf32>, vector<8x8xf32> -> vector<8x8xf32>
    %38 = arith.addf %37, %7 : vector<8x8xf32>
    %cst_30 = arith.constant dense<0xFF800000> : vector<8xf32>
    %39 = vector.multi_reduction <maximumf>, %38, %cst_30 [1] : vector<8x8xf32> to vector<8xf32>
    %40 = vector.shape_cast %39 : vector<8xf32> to vector<8x1xf32>
    %41 = vector.broadcast %40 : vector<8x1xf32> to vector<8x8xf32>
    %42 = arith.subf %38, %41 : vector<8x8xf32>
    %43 = math.exp %42 : vector<8x8xf32>
    %cst_31 = arith.constant dense<0.000000e+00> : vector<8xf32>
    %44 = vector.multi_reduction <add>, %43, %cst_31 [1] : vector<8x8xf32> to vector<8xf32>
    %45 = vector.shape_cast %44 : vector<8xf32> to vector<8x1xf32>
    %46 = tpu.reciprocal %45 {approx = true} : vector<8x1xf32> -> vector<8x1xf32>
    %47 = vector.broadcast %46 : vector<8x1xf32> to vector<8x8xf32>
    %48 = arith.mulf %43, %47 : vector<8x8xf32>
    %c0_32 = arith.constant 0 : index
    %c1 = arith.constant 1 : index
    %c0_33 = arith.constant 0 : index
    %c0_34 = arith.constant 0 : index
    %49 = vector.load %arg13[%c0_32, %c1, %c0_33, %c0_34] : memref<1x4x8x8xf32, #tpu.memory_space<vmem>>, vector<1x1x8x8xf32>
    %50 = vector.shape_cast %49 : vector<1x1x8x8xf32> to vector<8x8xf32>
    %51 = vector.shape_cast %48 : vector<8x8xf32> to vector<1x1x8x8xf32>
    tpu.vector_store %arg13[%c0_32, %c1, %c0_33, %c0_34], %51 {strides = array<i32>} : memref<1x4x8x8xf32, #tpu.memory_space<vmem>>, vector<1x1x8x8xf32>,
    %cst_35 = arith.constant dense<0.000000e+00> : vector<8x8xf32>
    %52 = tpu.matmul %48, %36, %cst_35 {dimension_numbers = #tpu.dot_dimension_numbers<[1], [0], [0], [1], [0, 0, 1, 1], [], []>} : vector<8x8xf32>, vector<8x8xf32>, vector<8x8xf32> -> vector<8x8xf32>
    %c0_36 = arith.constant 0 : index
    %c8 = arith.constant 8 : index
    %53 = vector.load %arg14[%c0_36, %c8] : memref<8x32xf32, #tpu.memory_space<vmem>>, vector<8x8xf32>
    tpu.vector_store %arg14[%c0_36, %c8], %52 {strides = array<i32>} : memref<8x32xf32, #tpu.memory_space<vmem>>, vector<8x8xf32>,
    %54 = vector.extract_strided_slice %9 {offsets = [0, 16], sizes = [8, 8], strides = [1, 1]} : vector<8x32xf32> to vector<8x8xf32>
    %55 = vector.extract_strided_slice %11 {offsets = [0, 16], sizes = [8, 8], strides = [1, 1]} : vector<8x32xf32> to vector<8x8xf32>
    %56 = vector.extract_strided_slice %13 {offsets = [0, 16], sizes = [8, 8], strides = [1, 1]} : vector<8x32xf32> to vector<8x8xf32>
    %cst_37 = arith.constant dense<0.000000e+00> : vector<8x8xf32>
    %57 = tpu.matmul %54, %55, %cst_37 {dimension_numbers = #tpu.dot_dimension_numbers<[1], [1], [0], [0], [0, 0, 1, 0], [], []>} : vector<8x8xf32>, vector<8x8xf32>, vector<8x8xf32> -> vector<8x8xf32>
    %58 = arith.addf %57, %7 : vector<8x8xf32>
    %cst_38 = arith.constant dense<0xFF800000> : vector<8xf32>
    %59 = vector.multi_reduction <maximumf>, %58, %cst_38 [1] : vector<8x8xf32> to vector<8xf32>
    %60 = vector.shape_cast %59 : vector<8xf32> to vector<8x1xf32>
    %61 = vector.broadcast %60 : vector<8x1xf32> to vector<8x8xf32>
    %62 = arith.subf %58, %61 : vector<8x8xf32>
    %63 = math.exp %62 : vector<8x8xf32>
    %cst_39 = arith.constant dense<0.000000e+00> : vector<8xf32>
    %64 = vector.multi_reduction <add>, %63, %cst_39 [1] : vector<8x8xf32> to vector<8xf32>
    %65 = vector.shape_cast %64 : vector<8xf32> to vector<8x1xf32>
    %66 = tpu.reciprocal %65 {approx = true} : vector<8x1xf32> -> vector<8x1xf32>
    %67 = vector.broadcast %66 : vector<8x1xf32> to vector<8x8xf32>
    %68 = arith.mulf %63, %67 : vector<8x8xf32>
    %c0_40 = arith.constant 0 : index
    %c2 = arith.constant 2 : index
    %c0_41 = arith.constant 0 : index
    %c0_42 = arith.constant 0 : index
    %69 = vector.load %arg13[%c0_40, %c2, %c0_41, %c0_42] : memref<1x4x8x8xf32, #tpu.memory_space<vmem>>, vector<1x1x8x8xf32>
    %70 = vector.shape_cast %69 : vector<1x1x8x8xf32> to vector<8x8xf32>
    %71 = vector.shape_cast %68 : vector<8x8xf32> to vector<1x1x8x8xf32>
    tpu.vector_store %arg13[%c0_40, %c2, %c0_41, %c0_42], %71 {strides = array<i32>} : memref<1x4x8x8xf32, #tpu.memory_space<vmem>>, vector<1x1x8x8xf32>,
    %cst_43 = arith.constant dense<0.000000e+00> : vector<8x8xf32>
    %72 = tpu.matmul %68, %56, %cst_43 {dimension_numbers = #tpu.dot_dimension_numbers<[1], [0], [0], [1], [0, 0, 1, 1], [], []>} : vector<8x8xf32>, vector<8x8xf32>, vector<8x8xf32> -> vector<8x8xf32>
    %c0_44 = arith.constant 0 : index
    %c16 = arith.constant 16 : index
    %73 = vector.load %arg14[%c0_44, %c16] : memref<8x32xf32, #tpu.memory_space<vmem>>, vector<8x8xf32>
    tpu.vector_store %arg14[%c0_44, %c16], %72 {strides = array<i32>} : memref<8x32xf32, #tpu.memory_space<vmem>>, vector<8x8xf32>,
    %74 = vector.extract_strided_slice %9 {offsets = [0, 24], sizes = [8, 8], strides = [1, 1]} : vector<8x32xf32> to vector<8x8xf32>
    %75 = vector.extract_strided_slice %11 {offsets = [0, 24], sizes = [8, 8], strides = [1, 1]} : vector<8x32xf32> to vector<8x8xf32>
    %76 = vector.extract_strided_slice %13 {offsets = [0, 24], sizes = [8, 8], strides = [1, 1]} : vector<8x32xf32> to vector<8x8xf32>
    %cst_45 = arith.constant dense<0.000000e+00> : vector<8x8xf32>
    %77 = tpu.matmul %74, %75, %cst_45 {dimension_numbers = #tpu.dot_dimension_numbers<[1], [1], [0], [0], [0, 0, 1, 0], [], []>} : vector<8x8xf32>, vector<8x8xf32>, vector<8x8xf32> -> vector<8x8xf32>
    %78 = arith.addf %77, %7 : vector<8x8xf32>
    %cst_46 = arith.constant dense<0xFF800000> : vector<8xf32>
    %79 = vector.multi_reduction <maximumf>, %78, %cst_46 [1] : vector<8x8xf32> to vector<8xf32>
    %80 = vector.shape_cast %79 : vector<8xf32> to vector<8x1xf32>
    %81 = vector.broadcast %80 : vector<8x1xf32> to vector<8x8xf32>
    %82 = arith.subf %78, %81 : vector<8x8xf32>
    %83 = math.exp %82 : vector<8x8xf32>
    %cst_47 = arith.constant dense<0.000000e+00> : vector<8xf32>
    %84 = vector.multi_reduction <add>, %83, %cst_47 [1] : vector<8x8xf32> to vector<8xf32>
    %85 = vector.shape_cast %84 : vector<8xf32> to vector<8x1xf32>
    %86 = tpu.reciprocal %85 {approx = true} : vector<8x1xf32> -> vector<8x1xf32>
    %87 = vector.broadcast %86 : vector<8x1xf32> to vector<8x8xf32>
    %88 = arith.mulf %83, %87 : vector<8x8xf32>
    %c0_48 = arith.constant 0 : index
    %c3 = arith.constant 3 : index
    %c0_49 = arith.constant 0 : index
    %c0_50 = arith.constant 0 : index
    %89 = vector.load %arg13[%c0_48, %c3, %c0_49, %c0_50] : memref<1x4x8x8xf32, #tpu.memory_space<vmem>>, vector<1x1x8x8xf32>
    %90 = vector.shape_cast %89 : vector<1x1x8x8xf32> to vector<8x8xf32>
    %91 = vector.shape_cast %88 : vector<8x8xf32> to vector<1x1x8x8xf32>
    tpu.vector_store %arg13[%c0_48, %c3, %c0_49, %c0_50], %91 {strides = array<i32>} : memref<1x4x8x8xf32, #tpu.memory_space<vmem>>, vector<1x1x8x8xf32>,
    %cst_51 = arith.constant dense<0.000000e+00> : vector<8x8xf32>
    %92 = tpu.matmul %88, %76, %cst_51 {dimension_numbers = #tpu.dot_dimension_numbers<[1], [0], [0], [1], [0, 0, 1, 1], [], []>} : vector<8x8xf32>, vector<8x8xf32>, vector<8x8xf32> -> vector<8x8xf32>
    %c0_52 = arith.constant 0 : index
    %c24 = arith.constant 24 : index
    %93 = vector.load %arg14[%c0_52, %c24] : memref<8x32xf32, #tpu.memory_space<vmem>>, vector<8x8xf32>
    tpu.vector_store %arg14[%c0_52, %c24], %92 {strides = array<i32>} : memref<8x32xf32, #tpu.memory_space<vmem>>, vector<8x8xf32>,
    %c0_53 = arith.constant 0 : index
    %c0_54 = arith.constant 0 : index
    %94 = vector.load %arg14[%c0_53, %c0_54] : memref<8x32xf32, #tpu.memory_space<vmem>>, vector<8x32xf32>
    %c0_55 = arith.constant 0 : index
    %c0_56 = arith.constant 0 : index
    %95 = vector.load %arg9[%c0_55, %c0_56] : memref<32x32xf32, #tpu.memory_space<vmem>>, vector<32x32xf32>
    %cst_57 = arith.constant dense<0.000000e+00> : vector<8x32xf32>
    %96 = tpu.matmul %94, %95, %cst_57 {dimension_numbers = #tpu.dot_dimension_numbers<[1], [0], [0], [1], [0, 0, 1, 1], [], []>} : vector<8x32xf32>, vector<32x32xf32>, vector<8x32xf32> -> vector<8x32xf32>
    %97 = arith.addf %96, %1 : vector<8x32xf32>
    %cst_58 = arith.constant dense<0.000000e+00> : vector<8xf32>
    %98 = vector.multi_reduction <add>, %97, %cst_58 [1] : vector<8x32xf32> to vector<8xf32>
    %99 = vector.shape_cast %98 : vector<8xf32> to vector<8x1xf32>
    %cst_59 = arith.constant 3.200000e+01 : f32
    %100 = vector.broadcast %cst_59 : f32 to vector<8x1xf32>
    %101 = arith.divf %99, %100 : vector<8x1xf32>
    %102 = vector.broadcast %101 : vector<8x1xf32> to vector<8x32xf32>
    %103 = arith.subf %97, %102 : vector<8x32xf32>
    %104 = arith.mulf %103, %103 : vector<8x32xf32>
    %cst_60 = arith.constant dense<0.000000e+00> : vector<8xf32>
    %105 = vector.multi_reduction <add>, %104, %cst_60 [1] : vector<8x32xf32> to vector<8xf32>
    %106 = vector.shape_cast %105 : vector<8xf32> to vector<8x1xf32>
    %cst_61 = arith.constant 3.200000e+01 : f32
    %107 = vector.broadcast %cst_61 : f32 to vector<8x1xf32>
    %108 = arith.divf %106, %107 : vector<8x1xf32>
    %109 = vector.broadcast %101 : vector<8x1xf32> to vector<8x32xf32>
    %110 = arith.subf %97, %109 : vector<8x32xf32>
    %cst_62 = arith.constant 9.99999974E-6 : f32
    %111 = vector.broadcast %cst_62 : f32 to vector<8x1xf32>
    %112 = arith.addf %108, %111 : vector<8x1xf32>
    %113 = math.rsqrt %112 : vector<8x1xf32>
    %114 = vector.broadcast %113 : vector<8x1xf32> to vector<8x32xf32>
    %115 = arith.mulf %110, %114 : vector<8x32xf32>
    %c0_63 = arith.constant 0 : index
    %c0_64 = arith.constant 0 : index
    %116 = vector.load %arg10[%c0_63, %c0_64] : memref<1x32xf32, #tpu.memory_space<vmem>>, vector<1x32xf32>
    %117 = vector.broadcast %116 : vector<1x32xf32> to vector<8x32xf32>
    %118 = arith.mulf %115, %117 : vector<8x32xf32>
    %c0_65 = arith.constant 0 : index
    %c0_66 = arith.constant 0 : index
    %119 = vector.load %arg11[%c0_65, %c0_66] : memref<1x32xf32, #tpu.memory_space<vmem>>, vector<1x32xf32>
    %120 = vector.broadcast %119 : vector<1x32xf32> to vector<8x32xf32>
    %121 = arith.addf %118, %120 : vector<8x32xf32>
    %c0_67 = arith.constant 0 : index
    %c0_68 = arith.constant 0 : index
    %c0_69 = arith.constant 0 : index
    %122 = vector.load %arg12[%c0_67, %c0_68, %c0_69] : memref<1x8x32xf32, #tpu.memory_space<vmem>>, vector<1x8x32xf32>
    %123 = vector.shape_cast %122 : vector<1x8x32xf32> to vector<8x32xf32>
    %124 = vector.shape_cast %121 : vector<8x32xf32> to vector<1x8x32xf32>
    tpu.vector_store %arg12[%c0_67, %c0_68, %c0_69], %124 {strides = array<i32>} : memref<1x8x32xf32, #tpu.memory_space<vmem>>, vector<1x8x32xf32>,
    return
  }
  func.func @transform_0(%arg0: i32, %arg1: i32) -> (i32, i32, i32) {
    %c0_i32 = arith.constant 0 : i32
    %c0_i32_0 = arith.constant 0 : i32
    return %arg0, %arg1, %c0_i32 : i32, i32, i32
  }
  func.func @transform_1(%arg0: i32, %arg1: i32) -> (i32, i32, i32) {
    %c0_i32 = arith.constant 0 : i32
    %c0_i32_0 = arith.constant 0 : i32
    %c0_i32_1 = arith.constant 0 : i32
    return %arg0, %c0_i32, %c0_i32_0 : i32, i32, i32
  }
  func.func @transform_2(%arg0: i32, %arg1: i32) -> (i32, i32, i32) {
    %c0_i32 = arith.constant 0 : i32
    %c0_i32_0 = arith.constant 0 : i32
    %c0_i32_1 = arith.constant 0 : i32
    return %arg0, %c0_i32, %c0_i32_0 : i32, i32, i32
  }
  func.func @transform_3(%arg0: i32, %arg1: i32) -> (i32, i32, i32) {
    %c0_i32 = arith.constant 0 : i32
    %c0_i32_0 = arith.constant 0 : i32
    return %arg0, %arg1, %c0_i32 : i32, i32, i32
  }
  func.func @transform_4(%arg0: i32, %arg1: i32) -> (i32, i32) {
    %c0_i32 = arith.constant 0 : i32
    %c0_i32_0 = arith.constant 0 : i32
    %c0_i32_1 = arith.constant 0 : i32
    return %c0_i32, %c0_i32_0 : i32, i32
  }
  func.func @transform_5(%arg0: i32, %arg1: i32) -> (i32, i32) {
    %c0_i32 = arith.constant 0 : i32
    %c0_i32_0 = arith.constant 0 : i32
    %c0_i32_1 = arith.constant 0 : i32
    return %c0_i32, %c0_i32_0 : i32, i32
  }
  func.func @transform_6(%arg0: i32, %arg1: i32) -> (i32, i32) {
    %c0_i32 = arith.constant 0 : i32
    %c0_i32_0 = arith.constant 0 : i32
    %c0_i32_1 = arith.constant 0 : i32
    return %c0_i32, %c0_i32_0 : i32, i32
  }
  func.func @transform_7(%arg0: i32, %arg1: i32) -> (i32, i32) {
    %c0_i32 = arith.constant 0 : i32
    %c0_i32_0 = arith.constant 0 : i32
    %c0_i32_1 = arith.constant 0 : i32
    return %c0_i32, %c0_i32_0 : i32, i32
  }
  func.func @transform_8(%arg0: i32, %arg1: i32) -> (i32, i32) {
    %c0_i32 = arith.constant 0 : i32
    %c0_i32_0 = arith.constant 0 : i32
    %c0_i32_1 = arith.constant 0 : i32
    return %c0_i32, %c0_i32_0 : i32, i32
  }
  func.func @transform_9(%arg0: i32, %arg1: i32) -> (i32, i32) {
    %c0_i32 = arith.constant 0 : i32
    %c0_i32_0 = arith.constant 0 : i32
    %c0_i32_1 = arith.constant 0 : i32
    return %c0_i32, %c0_i32_0 : i32, i32
  }
  func.func @transform_10(%arg0: i32, %arg1: i32) -> (i32, i32, i32) {
    %c0_i32 = arith.constant 0 : i32
    %c0_i32_0 = arith.constant 0 : i32
    return %arg0, %arg1, %c0_i32 : i32, i32, i32
  }
  func.func @transform_11(%arg0: i32, %arg1: i32) -> (i32, i32, i32, i32) {
    %c0_i32 = arith.constant 0 : i32
    %c0_i32_0 = arith.constant 0 : i32
    %c0_i32_1 = arith.constant 0 : i32
    return %arg0, %c0_i32, %arg1, %c0_i32_0 : i32, i32, i32, i32
  }
}

</mosaic_0001>

<llo_original>
// kernel: tpu_custom_call.1
$region0: #{tpu_custom_call.1}
  #allocation0 [shape = 'u32[]', space=smem, size = 0x4, offset = 0x4, fixed_abs, tag = 'smem constant byte address 0x4 - core index']
  #allocation1 [shape = 'u32[144,128]{1,0:T(1,128)}', space=vmem, size = 0x12000, scoped, tag = 'internal scratch']
  #allocation2 [shape = 'f32[8,32]{1,0:T(8,128)}', space=vmem, size = 0x1000, scoped, tag = 'scratch operand']
  %s0 = inlined_call_operand.hbm [shape: f32[2,8,32], index: 0, kind: input, shape index: {}]
  %s1 = inlined_call_operand.hbm [shape: f32[2,8,32], index: 1, kind: input, shape index: {}]
  %s2 = inlined_call_operand.hbm [shape: f32[2,8,32], index: 2, kind: input, shape index: {}]
  %s3 = inlined_call_operand.hbm [shape: f32[2,8,8], index: 3, kind: input, shape index: {}]
  %s4 = inlined_call_operand.hbm [shape: f32[32,32], index: 4, kind: input, shape index: {}]
  %s5 = inlined_call_operand.hbm [shape: f32[32,32], index: 5, kind: input, shape index: {}]
  %s6 = inlined_call_operand.hbm [shape: f32[32,32], index: 6, kind: input, shape index: {}]
  %s7 = inlined_call_operand.hbm [shape: f32[32,32], index: 7, kind: input, shape index: {}]
  %s8 = inlined_call_operand.vmem [shape: f32[1,32], index: 8, kind: input, shape index: {}]
  %s9 = inlined_call_operand.vmem [shape: f32[1,32], index: 9, kind: input, shape index: {}]
  %s10 = inlined_call_operand.hbm [shape: f32[2,8,32], index: 10, kind: output, shape index: {0}]
  %s11 = inlined_call_operand.hbm [shape: f32[2,4,8,8], index: 11, kind: output, shape index: {1}]
  %12 = xla_tuple %s10, %s11
  %s13 = sld [smem:[#allocation0]]
  $region113: #{tpu_custom_call.1} parent=0
    _
  %s15 = ssub.s32 1, %s13
  %s16 = scalar_select 0, %s15, %s13
  $region1: #{tpu_custom_call.1} parent=0
    #allocation3 [shape = 'u8[8192]{0}', space=vmem, size = 0x2000, scoped, tag = 'input window, operand 0']
    #allocation4 [shape = 's32[2]{0}', space=sflag, size = 0x8, scoped, tag = 'scoped memory for tpu_custom_call.1']
    #allocation5 [shape = 's32[2]{0}', space=sflag, size = 0x8, scoped, tag = 'scoped memory for tpu_custom_call.1']
    #allocation6 [shape = 'u8[8192]{0}', space=vmem, size = 0x2000, scoped, tag = 'input window, operand 1']
    #allocation7 [shape = 's32[2]{0}', space=sflag, size = 0x8, scoped, tag = 'scoped memory for tpu_custom_call.1']
    #allocation8 [shape = 'u8[8192]{0}', space=vmem, size = 0x2000, scoped, tag = 'input window, operand 2']
    #allocation9 [shape = 'u8[8192]{0}', space=vmem, size = 0x2000, scoped, tag = 'input window, operand 3']
    #allocation10 [shape = 's32[2]{0}', space=sflag, size = 0x8, scoped, tag = 'scoped memory for tpu_custom_call.1']
    #allocation11 [shape = 'u8[16384]{0}', space=vmem, size = 0x4000, scoped, tag = 'input window, operand 4, single buffered']
    #allocation12 [shape = 'u8[16384]{0}', space=vmem, size = 0x4000, scoped, tag = 'input window, operand 5, single buffered']
    #allocation13 [shape = 's32[1]{0}', space=sflag, size = 0x4, scoped, tag = 'scoped memory for tpu_custom_call.1']
    #allocation14 [shape = 'u8[16384]{0}', space=vmem, size = 0x4000, scoped, tag = 'input window, operand 6, single buffered']
    #allocation15 [shape = 'u8[16384]{0}', space=vmem, size = 0x4000, scoped, tag = 'input window, operand 7, single buffered']
    #allocation16 [shape = 's32[1]{0}', space=sflag, size = 0x4, scoped, tag = 'scoped memory for tpu_custom_call.1']
    #allocation17 [shape = 'u8[8192]{0}', space=vmem, size = 0x2000, scoped, tag = 'output window, operand 0']
    #allocation18 [shape = 'u8[32768]{0}', space=vmem, size = 0x8000, scoped, tag = 'output window, operand 1']
    #allocation19 [shape = 's32[2]{0}', space=sflag, size = 0x8, scoped, tag = 'scoped memory for tpu_custom_call.1']
    %17 = vsyncpa [#allocation4], 0
    %s18 = scalar_lea.sflag [#allocation4], 1
    %19 = vsyncpa %s18, 0
    %20 = vsyncpa [#allocation7], 0
    %s21 = scalar_lea.sflag [#allocation7], 1
    %22 = vsyncpa %s21, 0
    %23 = vsyncpa [#allocation10], 0
    %s24 = scalar_lea.sflag [#allocation10], 1
    %25 = vsyncpa %s24, 0
    %26 = vsyncpa [#allocation13], 0
    %27 = vsyncpa [#allocation16], 0
    %28 = vsyncpa [#allocation5], 0
    %s29 = scalar_lea.sflag [#allocation5], 1
    %30 = vsyncpa %s29, 0
    %31 = vsyncpa [#allocation19], 0
    %s32 = scalar_lea.sflag [#allocation19], 1
    %33 = vsyncpa %s32, 0
    loop: start=0, step=1, limit=4
    $region2: #{tpu_custom_call.1} parent=1 // loop_pre_header
      _
    $region3: #{tpu_custom_call.1} parent=1 // loop_header
      %s35 = sphi 0, %s39
      %p36 = scmp.ge.s32.totalorder %s35, 4
      %s42 = sphi 0, %s54
      %s43 = sphi 0, %s50
      %s44 = sphi 0, %s42
      %s45 = sphi 0, %s43
      %s46 = sphi 0, %s44
      %s47 = sphi 0, %s45
      %s59 = sphi 0, %s61
      %s62 = sphi 0, %s59
      %s63 = sphi 0, %s62
      %s79 = sphi 0, %s63
      %s85 = sphi 0, %s87
      %s88 = sphi 0, %s85
      %s89 = sphi 0, %s88
      %s105 = sphi 0, %s89
      %s111 = sphi 0, %s113
      %s114 = sphi 0, %s111
      %s115 = sphi 0, %s114
      %s131 = sphi 0, %s115
      %s139 = sphi 0, %s141
      %s142 = sphi 0, %s139
      %s143 = sphi 0, %s142
      %s159 = sphi 0, %s143
      %s163 = sphi 0, %s163
      %s165 = sphi 0, %s163
      %s166 = sphi 0, %s165
      %s180 = sphi 0, %s166
      %s184 = sphi 0, %s184
      %s186 = sphi 0, %s184
      %s187 = sphi 0, %s186
      %s201 = sphi 0, %s187
      %s205 = sphi 0, %s205
      %s207 = sphi 0, %s205
      %s208 = sphi 0, %s207
      %s222 = sphi 0, %s208
      %s226 = sphi 0, %s226
      %s228 = sphi 0, %s226
      %s229 = sphi 0, %s228
      %s243 = sphi 0, %s229
      %s247 = sphi 0, %s247
      %s249 = sphi 0, %s247
      %s250 = sphi 0, %s249
      %s264 = sphi 0, %s250
      %s268 = sphi 0, %s268
      %s270 = sphi 0, %s268
      %s271 = sphi 0, %s270
      %s285 = sphi 0, %s271
      %s293 = sphi 0, %s295
      %s296 = sphi 0, %s293
      %s297 = sphi 0, %s296
      %s313 = sphi 0, %s297
      %s321 = sphi 0, %s323
      %s324 = sphi 0, %s321
      %s325 = sphi 0, %s324
      %s341 = sphi 0, %s325
    $region4: #{tpu_custom_call.1} parent=1 // loop_header_branch
      %38 = sbr.rel (%p36) target = $region8
    $region5: #{tpu_custom_call.1} parent=1 // loop_body
      %s40 = ssub.s32 %s35, 1
      %s41 = ssub.s32 %s35, 2
      %s48 = sadd.s32 1, %s43
      %p49 = scmp.ge.s32.totalorder %s48, 1
      %s50 = scalar_select %p49, 0, %s48
      %s51 = sadd.s32 1, %s42
      %s52 = scalar_select %p49, %s51, %s42
      %p53 = scmp.ge.s32.totalorder %s52, 2
      %s54 = scalar_select %p53, 0, %s52
      %s55 = ssub.s32 %s42, %s54
      %s56 = ssub.s32 %s43, %s50
      %s57 = sor.u32 %s55, %s56
      %p58 = scmp.eq.s32.totalorder %s57, 0
      %s60 = sadd.s32 %s59, 1
      %s61 = scalar_select %p58, %s59, %s60
      %p64 = pneg %p58
      %p65 = scmp.eq.s32.totalorder %s35, 1
      %p66 = por %p64, %p65
      %p67 = scmp.ne.s32.totalorder %s59, %s62
      %p68 = scmp.eq.s32.totalorder %s35, 0
      %p69 = por %p67, %p68
      %p70 = scmp.ne.s32.totalorder %s59, %s62
      %p71 = scmp.eq.s32.totalorder %s40, 1
      %p72 = por %p70, %p71
      %p73 = scmp.ne.s32.totalorder %s62, %s63
      %p74 = scmp.eq.s32.totalorder %s40, 0
      %p75 = por %p73, %p74
      %p76 = scmp.ne.s32.totalorder %s62, %s63
      %p77 = scmp.eq.s32.totalorder %s41, 1
      %p78 = por %p76, %p77
      %p80 = scmp.ne.s32.totalorder %s63, %s79
      %p81 = scmp.eq.s32.totalorder %s41, 0
      %p82 = por %p80, %p81
      %s83 = ssub.s32 %s42, %s54
      %p84 = scmp.eq.s32.totalorder %s83, 0
      %s86 = sadd.s32 %s85, 1
      %s87 = scalar_select %p84, %s85, %s86
      %p90 = pneg %p84
      %p91 = scmp.eq.s32.totalorder %s35, 1
      %p92 = por %p90, %p91
      %p93 = scmp.ne.s32.totalorder %s85, %s88
      %p94 = scmp.eq.s32.totalorder %s35, 0
      %p95 = por %p93, %p94
      %p96 = scmp.ne.s32.totalorder %s85, %s88
      %p97 = scmp.eq.s32.totalorder %s40, 1
      %p98 = por %p96, %p97
      %p99 = scmp.ne.s32.totalorder %s88, %s89
      %p100 = scmp.eq.s32.totalorder %s40, 0
      %p101 = por %p99, %p100
      %p102 = scmp.ne.s32.totalorder %s88, %s89
      %p103 = scmp.eq.s32.totalorder %s41, 1
      %p104 = por %p102, %p103
      %p106 = scmp.ne.s32.totalorder %s89, %s105
      %p107 = scmp.eq.s32.totalorder %s41, 0
      %p108 = por %p106, %p107
      %s109 = ssub.s32 %s42, %s54
      %p110 = scmp.eq.s32.totalorder %s109, 0
      %s112 = sadd.s32 %s111, 1
      %s113 = scalar_select %p110, %s111, %s112
      %p116 = pneg %p110
      %p117 = scmp.eq.s32.totalorder %s35, 1
      %p118 = por %p116, %p117
      %p119 = scmp.ne.s32.totalorder %s111, %s114
      %p120 = scmp.eq.s32.totalorder %s35, 0
      %p121 = por %p119, %p120
      %p122 = scmp.ne.s32.totalorder %s111, %s114
      %p123 = scmp.eq.s32.totalorder %s40, 1
      %p124 = por %p122, %p123
      %p125 = scmp.ne.s32.totalorder %s114, %s115
      %p126 = scmp.eq.s32.totalorder %s40, 0
      %p127 = por %p125, %p126
      %p128 = scmp.ne.s32.totalorder %s114, %s115
      %p129 = scmp.eq.s32.totalorder %s41, 1
      %p130 = por %p128, %p129
      %p132 = scmp.ne.s32.totalorder %s115, %s131
      %p133 = scmp.eq.s32.totalorder %s41, 0
      %p134 = por %p132, %p133
      %s135 = ssub.s32 %s42, %s54
      %s136 = ssub.s32 %s43, %s50
      %s137 = sor.u32 %s135, %s136
      %p138 = scmp.eq.s32.totalorder %s137, 0
      %s140 = sadd.s32 %s139, 1
      %s141 = scalar_select %p138, %s139, %s140
      %p144 = pneg %p138
      %p145 = scmp.eq.s32.totalorder %s35, 1
      %p146 = por %p144, %p145
      %p147 = scmp.ne.s32.totalorder %s139, %s142
      %p148 = scmp.eq.s32.totalorder %s35, 0
      %p149 = por %p147, %p148
      %p150 = scmp.ne.s32.totalorder %s139, %s142
      %p151 = scmp.eq.s32.totalorder %s40, 1
      %p152 = por %p150, %p151
      %p153 = scmp.ne.s32.totalorder %s142, %s143
      %p154 = scmp.eq.s32.totalorder %s40, 0
      %p155 = por %p153, %p154
      %p156 = scmp.ne.s32.totalorder %s142, %s143
      %p157 = scmp.eq.s32.totalorder %s41, 1
      %p158 = por %p156, %p157
      %p160 = scmp.ne.s32.totalorder %s143, %s159
      %p161 = scmp.eq.s32.totalorder %s41, 0
      %p162 = por %p160, %p161
      %s164 = sadd.s32 %s163, 1
      %p167 = scmp.eq.s32.totalorder %s35, 1
      %p168 = scmp.ne.s32.totalorder %s163, %s165
      %p169 = scmp.eq.s32.totalorder %s35, 0
      %p170 = por %p168, %p169
      %p171 = scmp.ne.s32.totalorder %s163, %s165
      %p172 = scmp.eq.s32.totalorder %s40, 1
      %p173 = por %p171, %p172
      %p174 = scmp.ne.s32.totalorder %s165, %s166
      %p175 = scmp.eq.s32.totalorder %s40, 0
      %p176 = por %p174, %p175
      %p177 = scmp.ne.s32.totalorder %s165, %s166
      %p178 = scmp.eq.s32.totalorder %s41, 1
      %p179 = por %p177, %p178
      %p181 = scmp.ne.s32.totalorder %s166, %s180
      %p182 = scmp.eq.s32.totalorder %s41, 0
      %p183 = por %p181, %p182
      %s185 = sadd.s32 %s184, 1
      %p188 = scmp.eq.s32.totalorder %s35, 1
      %p189 = scmp.ne.s32.totalorder %s184, %s186
      %p190 = scmp.eq.s32.totalorder %s35, 0
      %p191 = por %p189, %p190
      %p192 = scmp.ne.s32.totalorder %s184, %s186
      %p193 = scmp.eq.s32.totalorder %s40, 1
      %p194 = por %p192, %p193
      %p195 = scmp.ne.s32.totalorder %s186, %s187
      %p196 = scmp.eq.s32.totalorder %s40, 0
      %p197 = por %p195, %p196
      %p198 = scmp.ne.s32.totalorder %s186, %s187
      %p199 = scmp.eq.s32.totalorder %s41, 1
      %p200 = por %p198, %p199
      %p202 = scmp.ne.s32.totalorder %s187, %s201
      %p203 = scmp.eq.s32.totalorder %s41, 0
      %p204 = por %p202, %p203
      %s206 = sadd.s32 %s205, 1
      %p209 = scmp.eq.s32.totalorder %s35, 1
      %p210 = scmp.ne.s32.totalorder %s205, %s207
      %p211 = scmp.eq.s32.totalorder %s35, 0
      %p212 = por %p210, %p211
      %p213 = scmp.ne.s32.totalorder %s205, %s207
      %p214 = scmp.eq.s32.totalorder %s40, 1
      %p215 = por %p213, %p214
      %p216 = scmp.ne.s32.totalorder %s207, %s208
      %p217 = scmp.eq.s32.totalorder %s40, 0
      %p218 = por %p216, %p217
      %p219 = scmp.ne.s32.totalorder %s207, %s208
      %p220 = scmp.eq.s32.totalorder %s41, 1
      %p221 = por %p219, %p220
      %p223 = scmp.ne.s32.totalorder %s208, %s222
      %p224 = scmp.eq.s32.totalorder %s41, 0
      %p225 = por %p223, %p224
      %s227 = sadd.s32 %s226, 1
      %p230 = scmp.eq.s32.totalorder %s35, 1
      %p231 = scmp.ne.s32.totalorder %s226, %s228
      %p232 = scmp.eq.s32.totalorder %s35, 0
      %p233 = por %p231, %p232
      %p234 = scmp.ne.s32.totalorder %s226, %s228
      %p235 = scmp.eq.s32.totalorder %s40, 1
      %p236 = por %p234, %p235
      %p237 = scmp.ne.s32.totalorder %s228, %s229
      %p238 = scmp.eq.s32.totalorder %s40, 0
      %p239 = por %p237, %p238
      %p240 = scmp.ne.s32.totalorder %s228, %s229
      %p241 = scmp.eq.s32.totalorder %s41, 1
      %p242 = por %p240, %p241
      %p244 = scmp.ne.s32.totalorder %s229, %s243
      %p245 = scmp.eq.s32.totalorder %s41, 0
      %p246 = por %p244, %p245
      %s248 = sadd.s32 %s247, 1
      %p251 = scmp.eq.s32.totalorder %s35, 1
      %p252 = scmp.ne.s32.totalorder %s247, %s249
      %p253 = scmp.eq.s32.totalorder %s35, 0
      %p254 = por %p252, %p253
      %p255 = scmp.ne.s32.totalorder %s247, %s249
      %p256 = scmp.eq.s32.totalorder %s40, 1
      %p257 = por %p255, %p256
      %p258 = scmp.ne.s32.totalorder %s249, %s250
      %p259 = scmp.eq.s32.totalorder %s40, 0
      %p260 = por %p258, %p259
      %p261 = scmp.ne.s32.totalorder %s249, %s250
      %p262 = scmp.eq.s32.totalorder %s41, 1
      %p263 = por %p261, %p262
      %p265 = scmp.ne.s32.totalorder %s250, %s264
      %p266 = scmp.eq.s32.totalorder %s41, 0
      %p267 = por %p265, %p266
      %s269 = sadd.s32 %s268, 1
      %p272 = scmp.eq.s32.totalorder %s35, 1
      %p273 = scmp.ne.s32.totalorder %s268, %s270
      %p274 = scmp.eq.s32.totalorder %s35, 0
      %p275 = por %p273, %p274
      %p276 = scmp.ne.s32.totalorder %s268, %s270
      %p277 = scmp.eq.s32.totalorder %s40, 1
      %p278 = por %p276, %p277
      %p279 = scmp.ne.s32.totalorder %s270, %s271
      %p280 = scmp.eq.s32.totalorder %s40, 0
      %p281 = por %p279, %p280
      %p282 = scmp.ne.s32.totalorder %s270, %s271
      %p283 = scmp.eq.s32.totalorder %s41, 1
      %p284 = por %p282, %p283
      %p286 = scmp.ne.s32.totalorder %s271, %s285
      %p287 = scmp.eq.s32.totalorder %s41, 0
      %p288 = por %p286, %p287
      %s289 = ssub.s32 %s42, %s54
      %s290 = ssub.s32 %s43, %s50
      %s291 = sor.u32 %s289, %s290
      %p292 = scmp.eq.s32.totalorder %s291, 0
      %s294 = sadd.s32 %s293, 1
      %s295 = scalar_select %p292, %s293, %s294
      %p298 = pneg %p292
      %p299 = scmp.eq.s32.totalorder %s35, 1
      %p300 = por %p298, %p299
      %p301 = scmp.ne.s32.totalorder %s293, %s296
      %p302 = scmp.eq.s32.totalorder %s35, 0
      %p303 = por %p301, %p302
      %p304 = scmp.ne.s32.totalorder %s293, %s296
      %p305 = scmp.eq.s32.totalorder %s40, 1
      %p306 = por %p304, %p305
      %p307 = scmp.ne.s32.totalorder %s296, %s297
      %p308 = scmp.eq.s32.totalorder %s40, 0
      %p309 = por %p307, %p308
      %p310 = scmp.ne.s32.totalorder %s296, %s297
      %p311 = scmp.eq.s32.totalorder %s41, 1
      %p312 = por %p310, %p311
      %p314 = scmp.ne.s32.totalorder %s297, %s313
      %p315 = scmp.eq.s32.totalorder %s41, 0
      %p316 = por %p314, %p315
      %s317 = ssub.s32 %s42, %s54
      %s318 = ssub.s32 %s43, %s50
      %s319 = sor.u32 %s317, %s318
      %p320 = scmp.eq.s32.totalorder %s319, 0
      %s322 = sadd.s32 %s321, 1
      %s323 = scalar_select %p320, %s321, %s322
      %p326 = pneg %p320
      %p327 = scmp.eq.s32.totalorder %s35, 1
      %p328 = por %p326, %p327
      %p329 = scmp.ne.s32.totalorder %s321, %s324
      %p330 = scmp.eq.s32.totalorder %s35, 0
      %p331 = por %p329, %p330
      %p332 = scmp.ne.s32.totalorder %s321, %s324
      %p333 = scmp.eq.s32.totalorder %s40, 1
      %p334 = por %p332, %p333
      %p335 = scmp.ne.s32.totalorder %s324, %s325
      %p336 = scmp.eq.s32.totalorder %s40, 0
      %p337 = por %p335, %p336
      %p338 = scmp.ne.s32.totalorder %s324, %s325
      %p339 = scmp.eq.s32.totalorder %s41, 1
      %p340 = por %p338, %p339
      %p342 = scmp.ne.s32.totalorder %s325, %s341
      %p343 = scmp.eq.s32.totalorder %s41, 0
      %p344 = por %p342, %p343
      %p345 = scmp.le.s32.totalorder 1, %s35
      %p346 = scmp.lt.s32.totalorder %s35, 3
      %p347 = pnand %p345, %p346
      %p348 = pneg %p347
      // Predicated region
      $region9: #{tpu_custom_call.1} parent=5 // pred_check
        _
      $region10: #{tpu_custom_call.1} parent=5 // pred_check_branch
        %350 = sbr.rel (%p347) target = $region12
      $region11: #{tpu_custom_call.1} parent=5 // pred_region
        %s351 = ssub.s32 %s35, 1
        // Predicated region
        $region13: #{tpu_custom_call.1} parent=11 // pred_check
          %p352 = pneg %p176
        $region14: #{tpu_custom_call.1} parent=11 // pred_check_branch
          %354 = sbr.rel (%p352) target = $region16
        $region15: #{tpu_custom_call.1} parent=11 // pred_region
          %s356 = ssub.s32 512, 512
          %357 = vsyncadd [#allocation10], %s356
          %s358 = sshll.u32 [#allocation11], 4
          %s359 = int_to_ptr.vmem [resolvable:$true] %s358
          %364 = dma.hbm_to_vmem [thread:$0]  %s4, 512, %s359, [#allocation10], 128, 128, 8
        $region16: #{tpu_custom_call.1} parent=11 // pred_fallthru
          _
        // Predicated region
        $region17: #{tpu_custom_call.1} parent=11 // pred_check
          %p365 = pneg %p197
        $region18: #{tpu_custom_call.1} parent=11 // pred_check_branch
          %367 = sbr.rel (%p365) target = $region20
        $region19: #{tpu_custom_call.1} parent=11 // pred_region
          %s369 = ssub.s32 512, 512
          %370 = vsyncadd [#allocation13], %s369
          %s371 = sshll.u32 [#allocation12], 4
          %s372 = int_to_ptr.vmem [resolvable:$true] %s371
          %377 = dma.hbm_to_vmem [thread:$0]  %s5, 512, %s372, [#allocation13], 128, 128, 8
        $region20: #{tpu_custom_call.1} parent=11 // pred_fallthru
          _
        // Predicated region
        $region21: #{tpu_custom_call.1} parent=11 // pred_check
          %p378 = pneg %p218
        $region22: #{tpu_custom_call.1} parent=11 // pred_check_branch
          %380 = sbr.rel (%p378) target = $region24
        $region23: #{tpu_custom_call.1} parent=11 // pred_region
          %s382 = ssub.s32 512, 512
          %383 = vsyncadd [#allocation13], %s382
          %s384 = sshll.u32 [#allocation14], 4
          %s385 = int_to_ptr.vmem [resolvable:$true] %s384
          %390 = dma.hbm_to_vmem [thread:$0]  %s6, 512, %s385, [#allocation13], 128, 128, 8
        $region24: #{tpu_custom_call.1} parent=11 // pred_fallthru
          _
        // Predicated region
        $region25: #{tpu_custom_call.1} parent=11 // pred_check
          %p391 = pneg %p239
        $region26: #{tpu_custom_call.1} parent=11 // pred_check_branch
          %393 = sbr.rel (%p391) target = $region28
        $region27: #{tpu_custom_call.1} parent=11 // pred_region
          %s395 = ssub.s32 512, 512
          %396 = vsyncadd [#allocation16], %s395
          %s397 = sshll.u32 [#allocation15], 4
          %s398 = int_to_ptr.vmem [resolvable:$true] %s397
          %403 = dma.hbm_to_vmem [thread:$0]  %s7, 512, %s398, [#allocation16], 128, 128, 8
        $region28: #{tpu_custom_call.1} parent=11 // pred_fallthru
          _
        // Predicated region
        $region29: #{tpu_custom_call.1} parent=11 // pred_check
          %p404 = pneg %p260
        $region30: #{tpu_custom_call.1} parent=11 // pred_check_branch
          %406 = sbr.rel (%p404) target = $region32
        $region31: #{tpu_custom_call.1} parent=11 // pred_region
          _
        $region32: #{tpu_custom_call.1} parent=11 // pred_fallthru
          _
        // Predicated region
        $region33: #{tpu_custom_call.1} parent=11 // pred_check
          %p407 = pneg %p281
        $region34: #{tpu_custom_call.1} parent=11 // pred_check_branch
          %409 = sbr.rel (%p407) target = $region36
        $region35: #{tpu_custom_call.1} parent=11 // pred_region
          _
        $region36: #{tpu_custom_call.1} parent=11 // pred_fallthru
          _
      $region12: #{tpu_custom_call.1} parent=5 // pred_fallthru
        _
      %p410 = scmp.lt.s32.totalorder %s35, 2
      // Predicated region
      $region37: #{tpu_custom_call.1} parent=5 // pred_check
        %p411 = pneg %p410
      $region38: #{tpu_custom_call.1} parent=5 // pred_check_branch
        %413 = sbr.rel (%p411) target = $region40
      $region39: #{tpu_custom_call.1} parent=5 // pred_region
        // Predicated region
        $region41: #{tpu_custom_call.1} parent=39 // pred_check
          %p414 = pneg %p69
        $region42: #{tpu_custom_call.1} parent=39 // pred_check_branch
          %416 = sbr.rel (%p414) target = $region44
        $region43: #{tpu_custom_call.1} parent=39 // pred_region
          %s417 = sand.u32 %s59, 1
          %s418 = scalar_lea.sflag [#allocation4], %s417
          %s419 = sand.u32 %s59, 1
          %s420 = smul.addr %s419, 8
          %s421 = scalar_lea.vmem [#allocation3], %s420
          %s423 = ssub.s32 128, 128
          %424 = vsyncadd %s418, %s423
          %s425 = sadd.s32 %s43, %s42
          %s426 = smul.addr %s425, 128
          %s427 = scalar_lea.hbm %s0, %s426
          %s429 = sshll.u32 %s421, 4
          %s430 = int_to_ptr.vmem [resolvable:$true] %s429
          %432 = dma.hbm_to_vmem [thread:$0]  %s427, 128, %s430, %s418
        $region44: #{tpu_custom_call.1} parent=39 // pred_fallthru
          _
        // Predicated region
        $region45: #{tpu_custom_call.1} parent=39 // pred_check
          %p433 = pneg %p95
        $region46: #{tpu_custom_call.1} parent=39 // pred_check_branch
          %435 = sbr.rel (%p433) target = $region48
        $region47: #{tpu_custom_call.1} parent=39 // pred_region
          %s436 = sand.u32 %s35, 1
          %s437 = scalar_lea.sflag [#allocation7], %s436
          %s438 = sand.u32 %s85, 1
          %s439 = smul.addr %s438, 8
          %s440 = scalar_lea.vmem [#allocation6], %s439
          %s442 = ssub.s32 128, 128
          %443 = vsyncadd %s437, %s442
          %s444 = smul.addr %s42, 128
          %s445 = scalar_lea.hbm %s1, %s444
          %s447 = sshll.u32 %s440, 4
          %s448 = int_to_ptr.vmem [resolvable:$true] %s447
          %450 = dma.hbm_to_vmem [thread:$0]  %s445, 128, %s448, %s437
        $region48: #{tpu_custom_call.1} parent=39 // pred_fallthru
          _
        // Predicated region
        $region49: #{tpu_custom_call.1} parent=39 // pred_check
          %p451 = pneg %p121
        $region50: #{tpu_custom_call.1} parent=39 // pred_check_branch
          %453 = sbr.rel (%p451) target = $region52
        $region51: #{tpu_custom_call.1} parent=39 // pred_region
          %s454 = sand.u32 %s35, 1
          %s455 = scalar_lea.sflag [#allocation7], %s454
          %s456 = sand.u32 %s111, 1
          %s457 = smul.addr %s456, 8
          %s458 = scalar_lea.vmem [#allocation8], %s457
          %s460 = ssub.s32 128, 128
          %461 = vsyncadd %s455, %s460
          %s462 = smul.addr %s42, 128
          %s463 = scalar_lea.hbm %s2, %s462
          %s465 = sshll.u32 %s458, 4
          %s466 = int_to_ptr.vmem [resolvable:$true] %s465
          %468 = dma.hbm_to_vmem [thread:$0]  %s463, 128, %s466, %s455
        $region52: #{tpu_custom_call.1} parent=39 // pred_fallthru
          _
        // Predicated region
        $region53: #{tpu_custom_call.1} parent=39 // pred_check
          %p469 = pneg %p149
        $region54: #{tpu_custom_call.1} parent=39 // pred_check_branch
          %471 = sbr.rel (%p469) target = $region56
        $region55: #{tpu_custom_call.1} parent=39 // pred_region
          %s472 = sand.u32 %s35, 1
          %s473 = scalar_lea.sflag [#allocation10], %s472
          %s474 = sand.u32 %s139, 1
          %s475 = smul.addr %s474, 8
          %s476 = scalar_lea.vmem [#allocation9], %s475
          %s478 = ssub.s32 128, 128
          %479 = vsyncadd %s473, %s478
          %s480 = sadd.s32 %s43, %s42
          %s481 = smul.addr %s480, 128
          %s482 = scalar_lea.hbm %s3, %s481
          %s484 = sshll.u32 %s476, 4
          %s485 = int_to_ptr.vmem [resolvable:$true] %s484
          %487 = dma.hbm_to_vmem [thread:$0]  %s482, 128, %s485, %s473
        $region56: #{tpu_custom_call.1} parent=39 // pred_fallthru
          _
      $region40: #{tpu_custom_call.1} parent=5 // pred_fallthru
        _
      %p488 = scmp.le.s32.totalorder 1, %s35
      %p489 = scmp.lt.s32.totalorder %s35, 3
      %p490 = pnand %p488, %p489
      %p491 = pneg %p490
      // Predicated region
      $region57: #{tpu_custom_call.1} parent=5 // pred_check
        _
      $region58: #{tpu_custom_call.1} parent=5 // pred_check_branch
        %493 = sbr.rel (%p490) target = $region60
      $region59: #{tpu_custom_call.1} parent=5 // pred_region
        %s494 = ssub.s32 %s35, 1
        %s495 = sand.u32 %s62, 1
        %s496 = scalar_lea.sflag [#allocation4], %s495
        %s497 = sand.u32 %s62, 1
        %s498 = smul.addr %s497, 8
        %s499 = scalar_lea.vmem [#allocation3], %s498
        // Predicated region
        $region61: #{tpu_custom_call.1} parent=59 // pred_check
          %p500 = pneg %p75
        $region62: #{tpu_custom_call.1} parent=59 // pred_check_branch
          %502 = sbr.rel (%p500) target = $region64
        $region63: #{tpu_custom_call.1} parent=59 // pred_region
          %503 = dma.done %s496, 128
        $region64: #{tpu_custom_call.1} parent=59 // pred_fallthru
          _
        %s504 = sand.u32 %s40, 1
        %s505 = scalar_lea.sflag [#allocation7], %s504
        %s506 = sand.u32 %s88, 1
        %s507 = smul.addr %s506, 8
        %s508 = scalar_lea.vmem [#allocation6], %s507
        // Predicated region
        $region65: #{tpu_custom_call.1} parent=59 // pred_check
          %p509 = pneg %p101
        $region66: #{tpu_custom_call.1} parent=59 // pred_check_branch
          %511 = sbr.rel (%p509) target = $region68
        $region67: #{tpu_custom_call.1} parent=59 // pred_region
          %512 = dma.done %s505, 128
        $region68: #{tpu_custom_call.1} parent=59 // pred_fallthru
          _
        %s513 = sand.u32 %s40, 1
        %s514 = scalar_lea.sflag [#allocation7], %s513
        %s515 = sand.u32 %s114, 1
        %s516 = smul.addr %s515, 8
        %s517 = scalar_lea.vmem [#allocation8], %s516
        // Predicated region
        $region69: #{tpu_custom_call.1} parent=59 // pred_check
          %p518 = pneg %p127
        $region70: #{tpu_custom_call.1} parent=59 // pred_check_branch
          %520 = sbr.rel (%p518) target = $region72
        $region71: #{tpu_custom_call.1} parent=59 // pred_region
          %521 = dma.done %s514, 128
        $region72: #{tpu_custom_call.1} parent=59 // pred_fallthru
          _
        %s522 = sand.u32 %s40, 1
        %s523 = scalar_lea.sflag [#allocation10], %s522
        %s524 = sand.u32 %s142, 1
        %s525 = smul.addr %s524, 8
        %s526 = scalar_lea.vmem [#allocation9], %s525
        // Predicated region
        $region73: #{tpu_custom_call.1} parent=59 // pred_check
          %p527 = pneg %p155
        $region74: #{tpu_custom_call.1} parent=59 // pred_check_branch
          %529 = sbr.rel (%p527) target = $region76
        $region75: #{tpu_custom_call.1} parent=59 // pred_region
          %530 = dma.done %s523, 128
        $region76: #{tpu_custom_call.1} parent=59 // pred_fallthru
          _
        // Predicated region
        $region77: #{tpu_custom_call.1} parent=59 // pred_check
          %p531 = pneg %p176
        $region78: #{tpu_custom_call.1} parent=59 // pred_check_branch
          %533 = sbr.rel (%p531) target = $region80
        $region79: #{tpu_custom_call.1} parent=59 // pred_region
          %534 = dma.done [#allocation10], 512
        $region80: #{tpu_custom_call.1} parent=59 // pred_fallthru
          _
        // Predicated region
        $region81: #{tpu_custom_call.1} parent=59 // pred_check
          %p535 = pneg %p197
        $region82: #{tpu_custom_call.1} parent=59 // pred_check_branch
          %537 = sbr.rel (%p535) target = $region84
        $region83: #{tpu_custom_call.1} parent=59 // pred_region
          %538 = dma.done [#allocation13], 512
        $region84: #{tpu_custom_call.1} parent=59 // pred_fallthru
          _
        // Predicated region
        $region85: #{tpu_custom_call.1} parent=59 // pred_check
          %p539 = pneg %p218
        $region86: #{tpu_custom_call.1} parent=59 // pred_check_branch
          %541 = sbr.rel (%p539) target = $region88
        $region87: #{tpu_custom_call.1} parent=59 // pred_region
          %542 = dma.done [#allocation13], 512
        $region88: #{tpu_custom_call.1} parent=59 // pred_fallthru
          _
        // Predicated region
        $region89: #{tpu_custom_call.1} parent=59 // pred_check
          %p543 = pneg %p239
        $region90: #{tpu_custom_call.1} parent=59 // pred_check_branch
          %545 = sbr.rel (%p543) target = $region92
        $region91: #{tpu_custom_call.1} parent=59 // pred_region
          %546 = dma.done [#allocation16], 512
        $region92: #{tpu_custom_call.1} parent=59 // pred_fallthru
          _
        %s547 = sand.u32 %s62, 1
        %s548 = scalar_lea.sflag [#allocation4], %s547
        %s549 = sand.u32 %s62, 1
        %s550 = smul.addr %s549, 8
        %s551 = scalar_lea.vmem [#allocation3], %s550
        %p552 = pneg %p75
        %p553 = pneg %p72
        %s554 = sand.u32 %s40, 1
        %s555 = scalar_lea.sflag [#allocation7], %s554
        %s556 = sand.u32 %s88, 1
        %s557 = smul.addr %s556, 8
        %s558 = scalar_lea.vmem [#allocation6], %s557
        %p559 = pneg %p101
        %p560 = pneg %p98
        %s561 = sand.u32 %s40, 1
        %s562 = scalar_lea.sflag [#allocation7], %s561
        %s563 = sand.u32 %s114, 1
        %s564 = smul.addr %s563, 8
        %s565 = scalar_lea.vmem [#allocation8], %s564
        %p566 = pneg %p127
        %p567 = pneg %p124
        %s568 = sand.u32 %s40, 1
        %s569 = scalar_lea.sflag [#allocation10], %s568
        %s570 = sand.u32 %s142, 1
        %s571 = smul.addr %s570, 8
        %s572 = scalar_lea.vmem [#allocation9], %s571
        %p573 = pneg %p155
        %p574 = pneg %p152
        %p575 = pneg %p176
        %p576 = pneg %p173
        %p577 = pneg %p197
        %p578 = pneg %p194
        %p579 = pneg %p218
        %p580 = pneg %p215
        %p581 = pneg %p239
        %p582 = pneg %p236
        %p583 = pneg %p260
        %p584 = pneg %p257
        %p585 = pneg %p281
        %p586 = pneg %p278
        %p587 = pneg %p309
        %p588 = pneg %p306
        %s589 = sand.u32 %s296, 1
        %s590 = scalar_lea.sflag [#allocation5], %s589
        %s591 = sand.u32 %s296, 1
        %s592 = smul.addr %s591, 8
        %s593 = scalar_lea.vmem [#allocation17], %s592
        %p594 = pneg %p337
        %p595 = pneg %p334
        %s596 = sand.u32 %s324, 1
        %s597 = scalar_lea.sflag [#allocation19], %s596
        %s598 = sand.u32 %s324, 1
        %s599 = smul.addr %s598, 32
        %s600 = scalar_lea.vmem [#allocation18], %s599
        %v601 = vld [vmem:[%s499] sm:$0xff]
        %v602 = vld [vmem:[%s508] sm:$0xff]
        %v603 = vld [vmem:[%s517] sm:$0xff]
        %v604 = vld [vmem:[%s526] sm:$0xff]
        %v605 = vld [vmem:[#allocation11] sm:$0xff]
        %v606 = vld [vmem:[#allocation11 + $0x8] sm:$0xff]
        %v607 = vld [vmem:[#allocation11 + $0x10] sm:$0xff]
        %v608 = vld [vmem:[#allocation11 + $0x18] sm:$0xff]
        %vm609 = vcmask 261120
        %v611 = vsel %vm609, %v601, 0
        %613 = vmatprep.subr.mxu0 0.0
        %614 = vmatpush1.msra.mxu0 %v605
        %615 = vmatprep.subr.mxu0 0.0
        %616 = vmatpush1.msra.mxu0 %v606
        %617 = vmatprep.subr.mxu0 0.0
        %618 = vmatpush1.msra.mxu0 %v607
        %619 = vmatprep.subr.mxu0 0.0
        %620 = vmatpush1.msra.mxu0 %v608
        %621 = vmatprep.subr.mxu0 0.0
        %622 = vmatpush1.msra.mxu0 0.0
        %623 = vmatprep.subr.mxu0 0.0
        %624 = vmatpush1.msra.mxu0 0.0
        %625 = vmatprep.subr.mxu0 0.0
        %626 = vmatpush1.msra.mxu0 0.0
        %627 = vmatprep.subr.mxu0 0.0
        %628 = vmatpush1.msra.mxu0 0.0
        %629 = vmatprep.subr.mxu0 0.0
        %630 = vmatpush1.msra.mxu0 0.0
        %631 = vmatprep.subr.mxu0 0.0
        %632 = vmatpush1.msra.mxu0 0.0
        %633 = vmatprep.subr.mxu0 0.0
        %634 = vmatpush1.msra.mxu0 0.0
        %635 = vmatprep.subr.mxu0 0.0
        %636 = vmatpush1.msra.mxu0 0.0
        %637 = vmatprep.subr.mxu0 0.0
        %638 = vmatpush1.msra.mxu0 0.0
        %639 = vmatprep.subr.mxu0 0.0
        %640 = vmatpush1.msra.mxu0 0.0
        %641 = vmatprep.subr.mxu0 0.0
        %642 = vmatpush1.msra.mxu0 0.0
        %643 = vmatprep.subr.mxu0 0.0
        %644 = vmatpush1.msra.mxu0 0.0
        %645 = vmatprep.subr.mxu0 0.0
        %646 = vmatpush1.msra.mxu0 0.0
        %647 = vmatprep.subr.mxu0 0.0
        %648 = vmatpush1.msra.mxu0 0.0
        %649 = vmatprep.subr.mxu0 0.0
        %650 = vmatpush1.msra.mxu0 0.0
        %651 = vmatprep.subr.mxu0 0.0
        %652 = vmatpush1.msra.mxu0 0.0
        %653 = vmatprep.subr.mxu0 0.0
        %654 = vmatpush1.msra.mxu0 0.0
        %655 = vmatprep.subr.mxu0 0.0
        %656 = vmatpush1.msra.mxu0 0.0
        %657 = vmatprep.subr.mxu0 0.0
        %658 = vmatpush1.msra.mxu0 0.0
        %659 = vmatprep.subr.mxu0 0.0
        %660 = vmatpush1.msra.mxu0 0.0
        %661 = vmatprep.subr.mxu0 0.0
        %662 = vmatpush1.msra.mxu0 0.0
        %663 = vmatprep.subr.mxu0 0.0
        %664 = vmatpush1.msra.mxu0 0.0
        %665 = vmatprep.subr.mxu0 0.0
        %666 = vmatpush1.msra.mxu0 0.0
        %667 = vmatprep.subr.mxu0 0.0
        %668 = vmatpush1.msra.mxu0 0.0
        %669 = vmatprep.subr.mxu0 0.0
        %670 = vmatpush1.msra.mxu0 0.0
        %671 = vmatprep.subr.mxu0 0.0
        %672 = vmatpush1.msra.mxu0 0.0
        %673 = vmatprep.subr.mxu0 0.0
        %674 = vmatpush1.msra.mxu0 0.0
        %675 = vmatprep.subr.mxu0 0.0
        %676 = vmatpush1.msra.mxu0 0.0
        %677 = vmatprep.mubr.f32.mxu0 0.0
        %678 = vmatmul.mubr.f32.gmra.mrb[0].mxu0 %v611
        %v679 = vpop.f32.mrb[0].mxu0
        %v680 = vadd.f32 0.0, %v679
        %v681 = vpop.f32.mrb[0].mxu0
        %682 = vdwg.mxu0
        %v683 = vld [vmem:[#allocation12] sm:$0xff]
        %v684 = vld [vmem:[#allocation12 + $0x8] sm:$0xff]
        %v685 = vld [vmem:[#allocation12 + $0x10] sm:$0xff]
        %v686 = vld [vmem:[#allocation12 + $0x18] sm:$0xff]
        %v688 = vsel %vm609, %v602, 0
        %690 = vmatprep.subr.mxu0 0.0
        %691 = vmatpush1.msra.mxu0 %v683
        %692 = vmatprep.subr.mxu0 0.0
        %693 = vmatpush1.msra.mxu0 %v684
        %694 = vmatprep.subr.mxu0 0.0
        %695 = vmatpush1.msra.mxu0 %v685
        %696 = vmatprep.subr.mxu0 0.0
        %697 = vmatpush1.msra.mxu0 %v686
        %698 = vmatprep.subr.mxu0 0.0
        %699 = vmatpush1.msra.mxu0 0.0
        %700 = vmatprep.subr.mxu0 0.0
        %701 = vmatpush1.msra.mxu0 0.0
        %702 = vmatprep.subr.mxu0 0.0
        %703 = vmatpush1.msra.mxu0 0.0
        %704 = vmatprep.subr.mxu0 0.0
        %705 = vmatpush1.msra.mxu0 0.0
        %706 = vmatprep.subr.mxu0 0.0
        %707 = vmatpush1.msra.mxu0 0.0
        %708 = vmatprep.subr.mxu0 0.0
        %709 = vmatpush1.msra.mxu0 0.0
        %710 = vmatprep.subr.mxu0 0.0
        %711 = vmatpush1.msra.mxu0 0.0
        %712 = vmatprep.subr.mxu0 0.0
        %713 = vmatpush1.msra.mxu0 0.0
        %714 = vmatprep.subr.mxu0 0.0
        %715 = vmatpush1.msra.mxu0 0.0
        %716 = vmatprep.subr.mxu0 0.0
        %717 = vmatpush1.msra.mxu0 0.0
        %718 = vmatprep.subr.mxu0 0.0
        %719 = vmatpush1.msra.mxu0 0.0
        %720 = vmatprep.subr.mxu0 0.0
        %721 = vmatpush1.msra.mxu0 0.0
        %722 = vmatprep.subr.mxu0 0.0
        %723 = vmatpush1.msra.mxu0 0.0
        %724 = vmatprep.subr.mxu0 0.0
        %725 = vmatpush1.msra.mxu0 0.0
        %726 = vmatprep.subr.mxu0 0.0
        %727 = vmatpush1.msra.mxu0 0.0
        %728 = vmatprep.subr.mxu0 0.0
        %729 = vmatpush1.msra.mxu0 0.0
        %730 = vmatprep.subr.mxu0 0.0
        %731 = vmatpush1.msra.mxu0 0.0
        %732 = vmatprep.subr.mxu0 0.0
        %733 = vmatpush1.msra.mxu0 0.0
        %734 = vmatprep.subr.mxu0 0.0
        %735 = vmatpush1.msra.mxu0 0.0
        %736 = vmatprep.subr.mxu0 0.0
        %737 = vmatpush1.msra.mxu0 0.0
        %738 = vmatprep.subr.mxu0 0.0
        %739 = vmatpush1.msra.mxu0 0.0
        %740 = vmatprep.subr.mxu0 0.0
        %741 = vmatpush1.msra.mxu0 0.0
        %742 = vmatprep.subr.mxu0 0.0
        %743 = vmatpush1.msra.mxu0 0.0
        %744 = vmatprep.subr.mxu0 0.0
        %745 = vmatpush1.msra.mxu0 0.0
        %746 = vmatprep.subr.mxu0 0.0
        %747 = vmatpush1.msra.mxu0 0.0
        %748 = vmatprep.subr.mxu0 0.0
        %749 = vmatpush1.msra.mxu0 0.0
        %750 = vmatprep.subr.mxu0 0.0
        %751 = vmatpush1.msra.mxu0 0.0
        %752 = vmatprep.subr.mxu0 0.0
        %753 = vmatpush1.msra.mxu0 0.0
        %754 = vmatprep.mubr.f32.mxu0 0.0
        %755 = vmatmul.mubr.f32.gmra.mrb[0].mxu0 %v688
        %v756 = vpop.f32.mrb[0].mxu0
        %v757 = vadd.f32 0.0, %v756
        %v758 = vpop.f32.mrb[0].mxu0
        %759 = vdwg.mxu0
        %v760 = vld [vmem:[#allocation14] sm:$0xff]
        %v761 = vld [vmem:[#allocation14 + $0x8] sm:$0xff]
        %v762 = vld [vmem:[#allocation14 + $0x10] sm:$0xff]
        %v763 = vld [vmem:[#allocation14 + $0x18] sm:$0xff]
        %v765 = vsel %vm609, %v603, 0
        %767 = vmatprep.subr.mxu0 0.0
        %768 = vmatpush1.msra.mxu0 %v760
        %769 = vmatprep.subr.mxu0 0.0
        %770 = vmatpush1.msra.mxu0 %v761
        %771 = vmatprep.subr.mxu0 0.0
        %772 = vmatpush1.msra.mxu0 %v762
        %773 = vmatprep.subr.mxu0 0.0
        %774 = vmatpush1.msra.mxu0 %v763
        %775 = vmatprep.subr.mxu0 0.0
        %776 = vmatpush1.msra.mxu0 0.0
        %777 = vmatprep.subr.mxu0 0.0
        %778 = vmatpush1.msra.mxu0 0.0
        %779 = vmatprep.subr.mxu0 0.0
        %780 = vmatpush1.msra.mxu0 0.0
        %781 = vmatprep.subr.mxu0 0.0
        %782 = vmatpush1.msra.mxu0 0.0
        %783 = vmatprep.subr.mxu0 0.0
        %784 = vmatpush1.msra.mxu0 0.0
        %785 = vmatprep.subr.mxu0 0.0
        %786 = vmatpush1.msra.mxu0 0.0
        %787 = vmatprep.subr.mxu0 0.0
        %788 = vmatpush1.msra.mxu0 0.0
        %789 = vmatprep.subr.mxu0 0.0
        %790 = vmatpush1.msra.mxu0 0.0
        %791 = vmatprep.subr.mxu0 0.0
        %792 = vmatpush1.msra.mxu0 0.0
        %793 = vmatprep.subr.mxu0 0.0
        %794 = vmatpush1.msra.mxu0 0.0
        %795 = vmatprep.subr.mxu0 0.0
        %796 = vmatpush1.msra.mxu0 0.0
        %797 = vmatprep.subr.mxu0 0.0
        %798 = vmatpush1.msra.mxu0 0.0
        %799 = vmatprep.subr.mxu0 0.0
        %800 = vmatpush1.msra.mxu0 0.0
        %801 = vmatprep.subr.mxu0 0.0
        %802 = vmatpush1.msra.mxu0 0.0
        %803 = vmatprep.subr.mxu0 0.0
        %804 = vmatpush1.msra.mxu0 0.0
        %805 = vmatprep.subr.mxu0 0.0
        %806 = vmatpush1.msra.mxu0 0.0
        %807 = vmatprep.subr.mxu0 0.0
        %808 = vmatpush1.msra.mxu0 0.0
        %809 = vmatprep.subr.mxu0 0.0
        %810 = vmatpush1.msra.mxu0 0.0
        %811 = vmatprep.subr.mxu0 0.0
        %812 = vmatpush1.msra.mxu0 0.0
        %813 = vmatprep.subr.mxu0 0.0
        %814 = vmatpush1.msra.mxu0 0.0
        %815 = vmatprep.subr.mxu0 0.0
        %816 = vmatpush1.msra.mxu0 0.0
        %817 = vmatprep.subr.mxu0 0.0
        %818 = vmatpush1.msra.mxu0 0.0
        %819 = vmatprep.subr.mxu0 0.0
        %820 = vmatpush1.msra.mxu0 0.0
        %821 = vmatprep.subr.mxu0 0.0
        %822 = vmatpush1.msra.mxu0 0.0
        %823 = vmatprep.subr.mxu0 0.0
        %824 = vmatpush1.msra.mxu0 0.0
        %825 = vmatprep.subr.mxu0 0.0
        %826 = vmatpush1.msra.mxu0 0.0
        %827 = vmatprep.subr.mxu0 0.0
        %828 = vmatpush1.msra.mxu0 0.0
        %829 = vmatprep.subr.mxu0 0.0
        %830 = vmatpush1.msra.mxu0 0.0
        %831 = vmatprep.mubr.f32.mxu0 0.0
        %832 = vmatmul.mubr.f32.gmra.mrb[0].mxu0 %v765
        %v833 = vpop.f32.mrb[0].mxu0
        %v834 = vadd.f32 0.0, %v833
        %v835 = vpop.f32.mrb[0].mxu0
        %836 = vdwg.mxu0
        %vm837 = vcmask 64512
        %v839 = vsel %vm837, %v680, 0
        %v842 = vsel %vm837, %v757, 0
        %844 = vmatprep.subr.mxu0 0.0
        %845 = vmatpush1.xpose.msra.mxu0 %v842
        %846 = vmatprep.subr.mxu0 0.0
        %847 = vmatpush1.xpose.msra.mxu0 0.0
        %848 = vmatprep.subr.mxu0 0.0
        %849 = vmatpush1.xpose.msra.mxu0 0.0
        %850 = vmatprep.subr.mxu0 0.0
        %851 = vmatpush1.xpose.msra.mxu0 0.0
        %852 = vmatprep.subr.mxu0 0.0
        %853 = vmatpush1.xpose.msra.mxu0 0.0
        %854 = vmatprep.subr.mxu0 0.0
        %855 = vmatpush1.xpose.msra.mxu0 0.0
        %856 = vmatprep.subr.mxu0 0.0
        %857 = vmatpush1.xpose.msra.mxu0 0.0
        %858 = vmatprep.subr.mxu0 0.0
        %859 = vmatpush1.xpose.msra.mxu0 0.0
        %860 = vmatprep.subr.mxu0 0.0
        %861 = vmatpush1.xpose.msra.mxu0 0.0
        %862 = vmatprep.subr.mxu0 0.0
        %863 = vmatpush1.xpose.msra.mxu0 0.0
        %864 = vmatprep.subr.mxu0 0.0
        %865 = vmatpush1.xpose.msra.mxu0 0.0
        %866 = vmatprep.subr.mxu0 0.0
        %867 = vmatpush1.xpose.msra.mxu0 0.0
        %868 = vmatprep.subr.mxu0 0.0
        %869 = vmatpush1.xpose.msra.mxu0 0.0
        %870 = vmatprep.subr.mxu0 0.0
        %871 = vmatpush1.xpose.msra.mxu0 0.0
        %872 = vmatprep.subr.mxu0 0.0
        %873 = vmatpush1.xpose.msra.mxu0 0.0
        %874 = vmatprep.subr.mxu0 0.0
        %875 = vmatpush1.xpose.msra.mxu0 0.0
        %876 = vmatprep.subr.mxu0 0.0
        %877 = vmatpush1.xpose.msra.mxu0 0.0
        %878 = vmatprep.subr.mxu0 0.0
        %879 = vmatpush1.xpose.msra.mxu0 0.0
        %880 = vmatprep.subr.mxu0 0.0
        %881 = vmatpush1.xpose.msra.mxu0 0.0
        %882 = vmatprep.subr.mxu0 0.0
        %883 = vmatpush1.xpose.msra.mxu0 0.0
        %884 = vmatprep.subr.mxu0 0.0
        %885 = vmatpush1.xpose.msra.mxu0 0.0
        %886 = vmatprep.subr.mxu0 0.0
        %887 = vmatpush1.xpose.msra.mxu0 0.0
        %888 = vmatprep.subr.mxu0 0.0
        %889 = vmatpush1.xpose.msra.mxu0 0.0
        %890 = vmatprep.subr.mxu0 0.0
        %891 = vmatpush1.xpose.msra.mxu0 0.0
        %892 = vmatprep.subr.mxu0 0.0
        %893 = vmatpush1.xpose.msra.mxu0 0.0
        %894 = vmatprep.subr.mxu0 0.0
        %895 = vmatpush1.xpose.msra.mxu0 0.0
        %896 = vmatprep.subr.mxu0 0.0
        %897 = vmatpush1.xpose.msra.mxu0 0.0
        %898 = vmatprep.subr.mxu0 0.0
        %899 = vmatpush1.xpose.msra.mxu0 0.0
        %900 = vmatprep.subr.mxu0 0.0
        %901 = vmatpush1.xpose.msra.mxu0 0.0
        %902 = vmatprep.subr.mxu0 0.0
        %903 = vmatpush1.xpose.msra.mxu0 0.0
        %904 = vmatprep.subr.mxu0 0.0
        %905 = vmatpush1.xpose.msra.mxu0 0.0
        %906 = vmatprep.subr.mxu0 0.0
        %907 = vmatpush1.xpose.msra.mxu0 0.0
        %908 = vmatprep.mubr.f32.mxu0 0.0
        %909 = vmatmul.mubr.f32.gmra.mrb[0].mxu0 %v839
        %v910 = vpop.f32.mrb[0].mxu0
        %v911 = vadd.f32 %v604, %v910
        %v912 = vpop.f32.mrb[0].mxu0
        %913 = vdwg.mxu0
        %v914 = vsel %vm837, %v911, -inf
        %915 = vmax.xlane.f32.xlu0 %v914
        %v916 = vpop.xlane.xlu0 %915
        %v917 = vsub.f32 %v911, %v916
        %v918 = vmul.f32 %v917, 1.442695
        %v919 = vpow.pop %v918
        %v920 = vsel %vm837, %v919, 0.0
        %921 = vadd.xlane.f32.xlu0 %v920
        %v922 = vpop.xlane.xlu0 %921
        %v923 = vrcp.pop %v922
        %v924 = vmul.f32 %v919, %v923
        %925 = vst.msk [vmem:[%s600] sm:$0xff] %vm837, %v924
        %v927 = vsel %vm837, %v924, 0
        %929 = vmatprep.subr.mxu0 0.0
        %930 = vmatpush1.msra.mxu0 %v834
        %931 = vmatprep.subr.mxu0 0.0
        %932 = vmatpush1.msra.mxu0 0.0
        %933 = vmatprep.subr.mxu0 0.0
        %934 = vmatpush1.msra.mxu0 0.0
        %935 = vmatprep.subr.mxu0 0.0
        %936 = vmatpush1.msra.mxu0 0.0
        %937 = vmatprep.subr.mxu0 0.0
        %938 = vmatpush1.msra.mxu0 0.0
        %939 = vmatprep.subr.mxu0 0.0
        %940 = vmatpush1.msra.mxu0 0.0
        %941 = vmatprep.subr.mxu0 0.0
        %942 = vmatpush1.msra.mxu0 0.0
        %943 = vmatprep.subr.mxu0 0.0
        %944 = vmatpush1.msra.mxu0 0.0
        %945 = vmatprep.subr.mxu0 0.0
        %946 = vmatpush1.msra.mxu0 0.0
        %947 = vmatprep.subr.mxu0 0.0
        %948 = vmatpush1.msra.mxu0 0.0
        %949 = vmatprep.subr.mxu0 0.0
        %950 = vmatpush1.msra.mxu0 0.0
        %951 = vmatprep.subr.mxu0 0.0
        %952 = vmatpush1.msra.mxu0 0.0
        %953 = vmatprep.subr.mxu0 0.0
        %954 = vmatpush1.msra.mxu0 0.0
        %955 = vmatprep.subr.mxu0 0.0
        %956 = vmatpush1.msra.mxu0 0.0
        %957 = vmatprep.subr.mxu0 0.0
        %958 = vmatpush1.msra.mxu0 0.0
        %959 = vmatprep.subr.mxu0 0.0
        %960 = vmatpush1.msra.mxu0 0.0
        %961 = vmatprep.subr.mxu0 0.0
        %962 = vmatpush1.msra.mxu0 0.0
        %963 = vmatprep.subr.mxu0 0.0
        %964 = vmatpush1.msra.mxu0 0.0
        %965 = vmatprep.subr.mxu0 0.0
        %966 = vmatpush1.msra.mxu0 0.0
        %967 = vmatprep.subr.mxu0 0.0
        %968 = vmatpush1.msra.mxu0 0.0
        %969 = vmatprep.subr.mxu0 0.0
        %970 = vmatpush1.msra.mxu0 0.0
        %971 = vmatprep.subr.mxu0 0.0
        %972 = vmatpush1.msra.mxu0 0.0
        %973 = vmatprep.subr.mxu0 0.0
        %974 = vmatpush1.msra.mxu0 0.0
        %975 = vmatprep.subr.mxu0 0.0
        %976 = vmatpush1.msra.mxu0 0.0
        %977 = vmatprep.subr.mxu0 0.0
        %978 = vmatpush1.msra.mxu0 0.0
        %979 = vmatprep.subr.mxu0 0.0
        %980 = vmatpush1.msra.mxu0 0.0
        %981 = vmatprep.subr.mxu0 0.0
        %982 = vmatpush1.msra.mxu0 0.0
        %983 = vmatprep.subr.mxu0 0.0
        %984 = vmatpush1.msra.mxu0 0.0
        %985 = vmatprep.subr.mxu0 0.0
        %986 = vmatpush1.msra.mxu0 0.0
        %987 = vmatprep.subr.mxu0 0.0
        %988 = vmatpush1.msra.mxu0 0.0
        %989 = vmatprep.subr.mxu0 0.0
        %990 = vmatpush1.msra.mxu0 0.0
        %991 = vmatprep.subr.mxu0 0.0
        %992 = vmatpush1.msra.mxu0 0.0
        %993 = vmatprep.mubr.f32.mxu0 0.0
        %994 = vmatmul.mubr.f32.gmra.mrb[0].mxu0 %v927
        %v995 = vpop.f32.mrb[0].mxu0
        %v996 = vadd.f32 0.0, %v995
        %v997 = vpop.f32.mrb[0].mxu0
        %998 = vdwg.mxu0
        %999 = vst.msk [vmem:[#allocation2] sm:$0xff] %vm837, %v996
        %1000 = vrot.lane.b32.xlu0 %v680, 120
        %v1001 = vpop.permute.xlu0 %1000
        %1002 = vrot.lane.b32.xlu0 %v757, 120
        %v1003 = vpop.permute.xlu0 %1002
        %v1004 = vsel %vm837, %v1001, 0
        %v1006 = vsel %vm837, %v1003, 0
        %1008 = vmatprep.subr.mxu0 0.0
        %1009 = vmatpush1.xpose.msra.mxu0 %v1006
        %1010 = vmatprep.subr.mxu0 0.0
        %1011 = vmatpush1.xpose.msra.mxu0 0.0
        %1012 = vmatprep.subr.mxu0 0.0
        %1013 = vmatpush1.xpose.msra.mxu0 0.0
        %1014 = vmatprep.subr.mxu0 0.0
        %1015 = vmatpush1.xpose.msra.mxu0 0.0
        %1016 = vmatprep.subr.mxu0 0.0
        %1017 = vmatpush1.xpose.msra.mxu0 0.0
        %1018 = vmatprep.subr.mxu0 0.0
        %1019 = vmatpush1.xpose.msra.mxu0 0.0
        %1020 = vmatprep.subr.mxu0 0.0
        %1021 = vmatpush1.xpose.msra.mxu0 0.0
        %1022 = vmatprep.subr.mxu0 0.0
        %1023 = vmatpush1.xpose.msra.mxu0 0.0
        %1024 = vmatprep.subr.mxu0 0.0
        %1025 = vmatpush1.xpose.msra.mxu0 0.0
        %1026 = vmatprep.subr.mxu0 0.0
        %1027 = vmatpush1.xpose.msra.mxu0 0.0
        %1028 = vmatprep.subr.mxu0 0.0
        %1029 = vmatpush1.xpose.msra.mxu0 0.0
        %1030 = vmatprep.subr.mxu0 0.0
        %1031 = vmatpush1.xpose.msra.mxu0 0.0
        %1032 = vmatprep.subr.mxu0 0.0
        %1033 = vmatpush1.xpose.msra.mxu0 0.0
        %1034 = vmatprep.subr.mxu0 0.0
        %1035 = vmatpush1.xpose.msra.mxu0 0.0
        %1036 = vmatprep.subr.mxu0 0.0
        %1037 = vmatpush1.xpose.msra.mxu0 0.0
        %1038 = vmatprep.subr.mxu0 0.0
        %1039 = vmatpush1.xpose.msra.mxu0 0.0
        %1040 = vmatprep.subr.mxu0 0.0
        %1041 = vmatpush1.xpose.msra.mxu0 0.0
        %1042 = vmatprep.subr.mxu0 0.0
        %1043 = vmatpush1.xpose.msra.mxu0 0.0
        %1044 = vmatprep.subr.mxu0 0.0
        %1045 = vmatpush1.xpose.msra.mxu0 0.0
        %1046 = vmatprep.subr.mxu0 0.0
        %1047 = vmatpush1.xpose.msra.mxu0 0.0
        %1048 = vmatprep.subr.mxu0 0.0
        %1049 = vmatpush1.xpose.msra.mxu0 0.0
        %1050 = vmatprep.subr.mxu0 0.0
        %1051 = vmatpush1.xpose.msra.mxu0 0.0
        %1052 = vmatprep.subr.mxu0 0.0
        %1053 = vmatpush1.xpose.msra.mxu0 0.0
        %1054 = vmatprep.subr.mxu0 0.0
        %1055 = vmatpush1.xpose.msra.mxu0 0.0
        %1056 = vmatprep.subr.mxu0 0.0
        %1057 = vmatpush1.xpose.msra.mxu0 0.0
        %1058 = vmatprep.subr.mxu0 0.0
        %1059 = vmatpush1.xpose.msra.mxu0 0.0
        %1060 = vmatprep.subr.mxu0 0.0
        %1061 = vmatpush1.xpose.msra.mxu0 0.0
        %1062 = vmatprep.subr.mxu0 0.0
        %1063 = vmatpush1.xpose.msra.mxu0 0.0
        %1064 = vmatprep.subr.mxu0 0.0
        %1065 = vmatpush1.xpose.msra.mxu0 0.0
        %1066 = vmatprep.subr.mxu0 0.0
        %1067 = vmatpush1.xpose.msra.mxu0 0.0
        %1068 = vmatprep.subr.mxu0 0.0
        %1069 = vmatpush1.xpose.msra.mxu0 0.0
        %1070 = vmatprep.subr.mxu0 0.0
        %1071 = vmatpush1.xpose.msra.mxu0 0.0
        %1072 = vmatprep.mubr.f32.mxu0 0.0
        %1073 = vmatmul.mubr.f32.gmra.mrb[0].mxu0 %v1004
        %v1074 = vpop.f32.mrb[0].mxu0
        %v1075 = vadd.f32 %v604, %v1074
        %v1076 = vpop.f32.mrb[0].mxu0
        %1077 = vdwg.mxu0
        %v1078 = vsel %vm837, %v1075, -inf
        %1079 = vmax.xlane.f32.xlu0 %v1078
        %v1080 = vpop.xlane.xlu0 %1079
        %v1081 = vsub.f32 %v1075, %v1080
        %v1082 = vmul.f32 %v1081, 1.442695
        %v1083 = vpow.pop %v1082
        %v1084 = vsel %vm837, %v1083, 0.0
        %1085 = vadd.xlane.f32.xlu0 %v1084
        %v1086 = vpop.xlane.xlu0 %1085
        %v1087 = vrcp.pop %v1086
        %v1088 = vmul.f32 %v1083, %v1087
        %s1089 = scalar_lea.vmem %s600, 8 [#allocation18]
        %1090 = vst.msk [vmem:[%s1089] sm:$0xff] %vm837, %v1088
        %1092 = vrot.lane.b32.xlu0 %v834, 120
        %v1093 = vpop.permute.xlu0 %1092
        %v1096 = vsel %vm837, %v1088, 0
        %1098 = vmatprep.subr.mxu0 0.0
        %1099 = vmatpush1.msra.mxu0 %v1093
        %1100 = vmatprep.subr.mxu0 0.0
        %1101 = vmatpush1.msra.mxu0 0.0
        %1102 = vmatprep.subr.mxu0 0.0
        %1103 = vmatpush1.msra.mxu0 0.0
        %1104 = vmatprep.subr.mxu0 0.0
        %1105 = vmatpush1.msra.mxu0 0.0
        %1106 = vmatprep.subr.mxu0 0.0
        %1107 = vmatpush1.msra.mxu0 0.0
        %1108 = vmatprep.subr.mxu0 0.0
        %1109 = vmatpush1.msra.mxu0 0.0
        %1110 = vmatprep.subr.mxu0 0.0
        %1111 = vmatpush1.msra.mxu0 0.0
        %1112 = vmatprep.subr.mxu0 0.0
        %1113 = vmatpush1.msra.mxu0 0.0
        %1114 = vmatprep.subr.mxu0 0.0
        %1115 = vmatpush1.msra.mxu0 0.0
        %1116 = vmatprep.subr.mxu0 0.0
        %1117 = vmatpush1.msra.mxu0 0.0
        %1118 = vmatprep.subr.mxu0 0.0
        %1119 = vmatpush1.msra.mxu0 0.0
        %1120 = vmatprep.subr.mxu0 0.0
        %1121 = vmatpush1.msra.mxu0 0.0
        %1122 = vmatprep.subr.mxu0 0.0
        %1123 = vmatpush1.msra.mxu0 0.0
        %1124 = vmatprep.subr.mxu0 0.0
        %1125 = vmatpush1.msra.mxu0 0.0
        %1126 = vmatprep.subr.mxu0 0.0
        %1127 = vmatpush1.msra.mxu0 0.0
        %1128 = vmatprep.subr.mxu0 0.0
        %1129 = vmatpush1.msra.mxu0 0.0
        %1130 = vmatprep.subr.mxu0 0.0
        %1131 = vmatpush1.msra.mxu0 0.0
        %1132 = vmatprep.subr.mxu0 0.0
        %1133 = vmatpush1.msra.mxu0 0.0
        %1134 = vmatprep.subr.mxu0 0.0
        %1135 = vmatpush1.msra.mxu0 0.0
        %1136 = vmatprep.subr.mxu0 0.0
        %1137 = vmatpush1.msra.mxu0 0.0
        %1138 = vmatprep.subr.mxu0 0.0
        %1139 = vmatpush1.msra.mxu0 0.0
        %1140 = vmatprep.subr.mxu0 0.0
        %1141 = vmatpush1.msra.mxu0 0.0
        %1142 = vmatprep.subr.mxu0 0.0
        %1143 = vmatpush1.msra.mxu0 0.0
        %1144 = vmatprep.subr.mxu0 0.0
        %1145 = vmatpush1.msra.mxu0 0.0
        %1146 = vmatprep.subr.mxu0 0.0
        %1147 = vmatpush1.msra.mxu0 0.0
        %1148 = vmatprep.subr.mxu0 0.0
        %1149 = vmatpush1.msra.mxu0 0.0
        %1150 = vmatprep.subr.mxu0 0.0
        %1151 = vmatpush1.msra.mxu0 0.0
        %1152 = vmatprep.subr.mxu0 0.0
        %1153 = vmatpush1.msra.mxu0 0.0
        %1154 = vmatprep.subr.mxu0 0.0
        %1155 = vmatpush1.msra.mxu0 0.0
        %1156 = vmatprep.subr.mxu0 0.0
        %1157 = vmatpush1.msra.mxu0 0.0
        %1158 = vmatprep.subr.mxu0 0.0
        %1159 = vmatpush1.msra.mxu0 0.0
        %1160 = vmatprep.subr.mxu0 0.0
        %1161 = vmatpush1.msra.mxu0 0.0
        %1162 = vmatprep.mubr.f32.mxu0 0.0
        %1163 = vmatmul.mubr.f32.gmra.mrb[0].mxu0 %v1096
        %v1164 = vpop.f32.mrb[0].mxu0
        %v1165 = vadd.f32 0.0, %v1164
        %v1166 = vpop.f32.mrb[0].mxu0
        %1167 = vdwg.mxu0
        %1169 = vrot.lane.b32.xlu0 %v1165, 8
        %v1170 = vpop.permute.xlu0 %1169
        %vm1172 = vcmask 130112
        %1173 = vst.msk [vmem:[#allocation2] sm:$0xff] %vm1172, %v1170
        %1174 = vrot.lane.b32.xlu0 %v680, 112
        %v1175 = vpop.permute.xlu0 %1174
        %1176 = vrot.lane.b32.xlu0 %v757, 112
        %v1177 = vpop.permute.xlu0 %1176
        %v1178 = vsel %vm837, %v1175, 0
        %v1180 = vsel %vm837, %v1177, 0
        %1182 = vmatprep.subr.mxu0 0.0
        %1183 = vmatpush1.xpose.msra.mxu0 %v1180
        %1184 = vmatprep.subr.mxu0 0.0
        %1185 = vmatpush1.xpose.msra.mxu0 0.0
        %1186 = vmatprep.subr.mxu0 0.0
        %1187 = vmatpush1.xpose.msra.mxu0 0.0
        %1188 = vmatprep.subr.mxu0 0.0
        %1189 = vmatpush1.xpose.msra.mxu0 0.0
        %1190 = vmatprep.subr.mxu0 0.0
        %1191 = vmatpush1.xpose.msra.mxu0 0.0
        %1192 = vmatprep.subr.mxu0 0.0
        %1193 = vmatpush1.xpose.msra.mxu0 0.0
        %1194 = vmatprep.subr.mxu0 0.0
        %1195 = vmatpush1.xpose.msra.mxu0 0.0
        %1196 = vmatprep.subr.mxu0 0.0
        %1197 = vmatpush1.xpose.msra.mxu0 0.0
        %1198 = vmatprep.subr.mxu0 0.0
        %1199 = vmatpush1.xpose.msra.mxu0 0.0
        %1200 = vmatprep.subr.mxu0 0.0
        %1201 = vmatpush1.xpose.msra.mxu0 0.0
        %1202 = vmatprep.subr.mxu0 0.0
        %1203 = vmatpush1.xpose.msra.mxu0 0.0
        %1204 = vmatprep.subr.mxu0 0.0
        %1205 = vmatpush1.xpose.msra.mxu0 0.0
        %1206 = vmatprep.subr.mxu0 0.0
        %1207 = vmatpush1.xpose.msra.mxu0 0.0
        %1208 = vmatprep.subr.mxu0 0.0
        %1209 = vmatpush1.xpose.msra.mxu0 0.0
        %1210 = vmatprep.subr.mxu0 0.0
        %1211 = vmatpush1.xpose.msra.mxu0 0.0
        %1212 = vmatprep.subr.mxu0 0.0
        %1213 = vmatpush1.xpose.msra.mxu0 0.0
        %1214 = vmatprep.subr.mxu0 0.0
        %1215 = vmatpush1.xpose.msra.mxu0 0.0
        %1216 = vmatprep.subr.mxu0 0.0
        %1217 = vmatpush1.xpose.msra.mxu0 0.0
        %1218 = vmatprep.subr.mxu0 0.0
        %1219 = vmatpush1.xpose.msra.mxu0 0.0
        %1220 = vmatprep.subr.mxu0 0.0
        %1221 = vmatpush1.xpose.msra.mxu0 0.0
        %1222 = vmatprep.subr.mxu0 0.0
        %1223 = vmatpush1.xpose.msra.mxu0 0.0
        %1224 = vmatprep.subr.mxu0 0.0
        %1225 = vmatpush1.xpose.msra.mxu0 0.0
        %1226 = vmatprep.subr.mxu0 0.0
        %1227 = vmatpush1.xpose.msra.mxu0 0.0
        %1228 = vmatprep.subr.mxu0 0.0
        %1229 = vmatpush1.xpose.msra.mxu0 0.0
        %1230 = vmatprep.subr.mxu0 0.0
        %1231 = vmatpush1.xpose.msra.mxu0 0.0
        %1232 = vmatprep.subr.mxu0 0.0
        %1233 = vmatpush1.xpose.msra.mxu0 0.0
        %1234 = vmatprep.subr.mxu0 0.0
        %1235 = vmatpush1.xpose.msra.mxu0 0.0
        %1236 = vmatprep.subr.mxu0 0.0
        %1237 = vmatpush1.xpose.msra.mxu0 0.0
        %1238 = vmatprep.subr.mxu0 0.0
        %1239 = vmatpush1.xpose.msra.mxu0 0.0
        %1240 = vmatprep.subr.mxu0 0.0
        %1241 = vmatpush1.xpose.msra.mxu0 0.0
        %1242 = vmatprep.subr.mxu0 0.0
        %1243 = vmatpush1.xpose.msra.mxu0 0.0
        %1244 = vmatprep.subr.mxu0 0.0
        %1245 = vmatpush1.xpose.msra.mxu0 0.0
        %1246 = vmatprep.mubr.f32.mxu0 0.0
        %1247 = vmatmul.mubr.f32.gmra.mrb[0].mxu0 %v1178
        %v1248 = vpop.f32.mrb[0].mxu0
        %v1249 = vadd.f32 %v604, %v1248
        %v1250 = vpop.f32.mrb[0].mxu0
        %1251 = vdwg.mxu0
        %v1252 = vsel %vm837, %v1249, -inf
        %1253 = vmax.xlane.f32.xlu0 %v1252
        %v1254 = vpop.xlane.xlu0 %1253
        %v1255 = vsub.f32 %v1249, %v1254
        %v1256 = vmul.f32 %v1255, 1.442695
        %v1257 = vpow.pop %v1256
        %v1258 = vsel %vm837, %v1257, 0.0
        %1259 = vadd.xlane.f32.xlu0 %v1258
        %v1260 = vpop.xlane.xlu0 %1259
        %v1261 = vrcp.pop %v1260
        %v1262 = vmul.f32 %v1257, %v1261
        %s1263 = scalar_lea.vmem %s600, 16 [#allocation18]
        %1264 = vst.msk [vmem:[%s1263] sm:$0xff] %vm837, %v1262
        %1265 = vrot.lane.b32.xlu0 %v834, 112
        %v1266 = vpop.permute.xlu0 %1265
        %v1269 = vsel %vm837, %v1262, 0
        %1271 = vmatprep.subr.mxu0 0.0
        %1272 = vmatpush1.msra.mxu0 %v1266
        %1273 = vmatprep.subr.mxu0 0.0
        %1274 = vmatpush1.msra.mxu0 0.0
        %1275 = vmatprep.subr.mxu0 0.0
        %1276 = vmatpush1.msra.mxu0 0.0
        %1277 = vmatprep.subr.mxu0 0.0
        %1278 = vmatpush1.msra.mxu0 0.0
        %1279 = vmatprep.subr.mxu0 0.0
        %1280 = vmatpush1.msra.mxu0 0.0
        %1281 = vmatprep.subr.mxu0 0.0
        %1282 = vmatpush1.msra.mxu0 0.0
        %1283 = vmatprep.subr.mxu0 0.0
        %1284 = vmatpush1.msra.mxu0 0.0
        %1285 = vmatprep.subr.mxu0 0.0
        %1286 = vmatpush1.msra.mxu0 0.0
        %1287 = vmatprep.subr.mxu0 0.0
        %1288 = vmatpush1.msra.mxu0 0.0
        %1289 = vmatprep.subr.mxu0 0.0
        %1290 = vmatpush1.msra.mxu0 0.0
        %1291 = vmatprep.subr.mxu0 0.0
        %1292 = vmatpush1.msra.mxu0 0.0
        %1293 = vmatprep.subr.mxu0 0.0
        %1294 = vmatpush1.msra.mxu0 0.0
        %1295 = vmatprep.subr.mxu0 0.0
        %1296 = vmatpush1.msra.mxu0 0.0
        %1297 = vmatprep.subr.mxu0 0.0
        %1298 = vmatpush1.msra.mxu0 0.0
        %1299 = vmatprep.subr.mxu0 0.0
        %1300 = vmatpush1.msra.mxu0 0.0
        %1301 = vmatprep.subr.mxu0 0.0
        %1302 = vmatpush1.msra.mxu0 0.0
        %1303 = vmatprep.subr.mxu0 0.0
        %1304 = vmatpush1.msra.mxu0 0.0
        %1305 = vmatprep.subr.mxu0 0.0
        %1306 = vmatpush1.msra.mxu0 0.0
        %1307 = vmatprep.subr.mxu0 0.0
        %1308 = vmatpush1.msra.mxu0 0.0
        %1309 = vmatprep.subr.mxu0 0.0
        %1310 = vmatpush1.msra.mxu0 0.0
        %1311 = vmatprep.subr.mxu0 0.0
        %1312 = vmatpush1.msra.mxu0 0.0
        %1313 = vmatprep.subr.mxu0 0.0
        %1314 = vmatpush1.msra.mxu0 0.0
        %1315 = vmatprep.subr.mxu0 0.0
        %1316 = vmatpush1.msra.mxu0 0.0
        %1317 = vmatprep.subr.mxu0 0.0
        %1318 = vmatpush1.msra.mxu0 0.0
        %1319 = vmatprep.subr.mxu0 0.0
        %1320 = vmatpush1.msra.mxu0 0.0
        %1321 = vmatprep.subr.mxu0 0.0
        %1322 = vmatpush1.msra.mxu0 0.0
        %1323 = vmatprep.subr.mxu0 0.0
        %1324 = vmatpush1.msra.mxu0 0.0
        %1325 = vmatprep.subr.mxu0 0.0
        %1326 = vmatpush1.msra.mxu0 0.0
        %1327 = vmatprep.subr.mxu0 0.0
        %1328 = vmatpush1.msra.mxu0 0.0
        %1329 = vmatprep.subr.mxu0 0.0
        %1330 = vmatpush1.msra.mxu0 0.0
        %1331 = vmatprep.subr.mxu0 0.0
        %1332 = vmatpush1.msra.mxu0 0.0
        %1333 = vmatprep.subr.mxu0 0.0
        %1334 = vmatpush1.msra.mxu0 0.0
        %1335 = vmatprep.mubr.f32.mxu0 0.0
        %1336 = vmatmul.mubr.f32.gmra.mrb[0].mxu0 %v1269
        %v1337 = vpop.f32.mrb[0].mxu0
        %v1338 = vadd.f32 0.0, %v1337
        %v1339 = vpop.f32.mrb[0].mxu0
        %1340 = vdwg.mxu0
        %1342 = vrot.lane.b32.xlu0 %v1338, 16
        %v1343 = vpop.permute.xlu0 %1342
        %vm1345 = vcmask 195712
        %1346 = vst.msk [vmem:[#allocation2] sm:$0xff] %vm1345, %v1343
        %1347 = vrot.lane.b32.xlu0 %v680, 104
        %v1348 = vpop.permute.xlu0 %1347
        %1349 = vrot.lane.b32.xlu0 %v757, 104
        %v1350 = vpop.permute.xlu0 %1349
        %v1351 = vsel %vm837, %v1348, 0
        %v1353 = vsel %vm837, %v1350, 0
        %1355 = vmatprep.subr.mxu0 0.0
        %1356 = vmatpush1.xpose.msra.mxu0 %v1353
        %1357 = vmatprep.subr.mxu0 0.0
        %1358 = vmatpush1.xpose.msra.mxu0 0.0
        %1359 = vmatprep.subr.mxu0 0.0
        %1360 = vmatpush1.xpose.msra.mxu0 0.0
        %1361 = vmatprep.subr.mxu0 0.0
        %1362 = vmatpush1.xpose.msra.mxu0 0.0
        %1363 = vmatprep.subr.mxu0 0.0
        %1364 = vmatpush1.xpose.msra.mxu0 0.0
        %1365 = vmatprep.subr.mxu0 0.0
        %1366 = vmatpush1.xpose.msra.mxu0 0.0
        %1367 = vmatprep.subr.mxu0 0.0
        %1368 = vmatpush1.xpose.msra.mxu0 0.0
        %1369 = vmatprep.subr.mxu0 0.0
        %1370 = vmatpush1.xpose.msra.mxu0 0.0
        %1371 = vmatprep.subr.mxu0 0.0
        %1372 = vmatpush1.xpose.msra.mxu0 0.0
        %1373 = vmatprep.subr.mxu0 0.0
        %1374 = vmatpush1.xpose.msra.mxu0 0.0
        %1375 = vmatprep.subr.mxu0 0.0
        %1376 = vmatpush1.xpose.msra.mxu0 0.0
        %1377 = vmatprep.subr.mxu0 0.0
        %1378 = vmatpush1.xpose.msra.mxu0 0.0
        %1379 = vmatprep.subr.mxu0 0.0
        %1380 = vmatpush1.xpose.msra.mxu0 0.0
        %1381 = vmatprep.subr.mxu0 0.0
        %1382 = vmatpush1.xpose.msra.mxu0 0.0
        %1383 = vmatprep.subr.mxu0 0.0
        %1384 = vmatpush1.xpose.msra.mxu0 0.0
        %1385 = vmatprep.subr.mxu0 0.0
        %1386 = vmatpush1.xpose.msra.mxu0 0.0
        %1387 = vmatprep.subr.mxu0 0.0
        %1388 = vmatpush1.xpose.msra.mxu0 0.0
        %1389 = vmatprep.subr.mxu0 0.0
        %1390 = vmatpush1.xpose.msra.mxu0 0.0
        %1391 = vmatprep.subr.mxu0 0.0
        %1392 = vmatpush1.xpose.msra.mxu0 0.0
        %1393 = vmatprep.subr.mxu0 0.0
        %1394 = vmatpush1.xpose.msra.mxu0 0.0
        %1395 = vmatprep.subr.mxu0 0.0
        %1396 = vmatpush1.xpose.msra.mxu0 0.0
        %1397 = vmatprep.subr.mxu0 0.0
        %1398 = vmatpush1.xpose.msra.mxu0 0.0
        %1399 = vmatprep.subr.mxu0 0.0
        %1400 = vmatpush1.xpose.msra.mxu0 0.0
        %1401 = vmatprep.subr.mxu0 0.0
        %1402 = vmatpush1.xpose.msra.mxu0 0.0
        %1403 = vmatprep.subr.mxu0 0.0
        %1404 = vmatpush1.xpose.msra.mxu0 0.0
        %1405 = vmatprep.subr.mxu0 0.0
        %1406 = vmatpush1.xpose.msra.mxu0 0.0
        %1407 = vmatprep.subr.mxu0 0.0
        %1408 = vmatpush1.xpose.msra.mxu0 0.0
        %1409 = vmatprep.subr.mxu0 0.0
        %1410 = vmatpush1.xpose.msra.mxu0 0.0
        %1411 = vmatprep.subr.mxu0 0.0
        %1412 = vmatpush1.xpose.msra.mxu0 0.0
        %1413 = vmatprep.subr.mxu0 0.0
        %1414 = vmatpush1.xpose.msra.mxu0 0.0
        %1415 = vmatprep.subr.mxu0 0.0
        %1416 = vmatpush1.xpose.msra.mxu0 0.0
        %1417 = vmatprep.subr.mxu0 0.0
        %1418 = vmatpush1.xpose.msra.mxu0 0.0
        %1419 = vmatprep.mubr.f32.mxu0 0.0
        %1420 = vmatmul.mubr.f32.gmra.mrb[0].mxu0 %v1351
        %v1421 = vpop.f32.mrb[0].mxu0
        %v1422 = vadd.f32 %v604, %v1421
        %v1423 = vpop.f32.mrb[0].mxu0
        %1424 = vdwg.mxu0
        %v1425 = vsel %vm837, %v1422, -inf
        %1426 = vmax.xlane.f32.xlu0 %v1425
        %v1427 = vpop.xlane.xlu0 %1426
        %v1428 = vsub.f32 %v1422, %v1427
        %v1429 = vmul.f32 %v1428, 1.442695
        %v1430 = vpow.pop %v1429
        %v1431 = vsel %vm837, %v1430, 0.0
        %1432 = vadd.xlane.f32.xlu0 %v1431
        %v1433 = vpop.xlane.xlu0 %1432
        %v1434 = vrcp.pop %v1433
        %v1435 = vmul.f32 %v1430, %v1434
        %s1436 = scalar_lea.vmem %s600, 24 [#allocation18]
        %1437 = vst.msk [vmem:[%s1436] sm:$0xff] %vm837, %v1435
        %1438 = vrot.lane.b32.xlu0 %v834, 104
        %v1439 = vpop.permute.xlu0 %1438
        %v1442 = vsel %vm837, %v1435, 0
        %1444 = vmatprep.subr.mxu0 0.0
        %1445 = vmatpush1.msra.mxu0 %v1439
        %1446 = vmatprep.subr.mxu0 0.0
        %1447 = vmatpush1.msra.mxu0 0.0
        %1448 = vmatprep.subr.mxu0 0.0
        %1449 = vmatpush1.msra.mxu0 0.0
        %1450 = vmatprep.subr.mxu0 0.0
        %1451 = vmatpush1.msra.mxu0 0.0
        %1452 = vmatprep.subr.mxu0 0.0
        %1453 = vmatpush1.msra.mxu0 0.0
        %1454 = vmatprep.subr.mxu0 0.0
        %1455 = vmatpush1.msra.mxu0 0.0
        %1456 = vmatprep.subr.mxu0 0.0
        %1457 = vmatpush1.msra.mxu0 0.0
        %1458 = vmatprep.subr.mxu0 0.0
        %1459 = vmatpush1.msra.mxu0 0.0
        %1460 = vmatprep.subr.mxu0 0.0
        %1461 = vmatpush1.msra.mxu0 0.0
        %1462 = vmatprep.subr.mxu0 0.0
        %1463 = vmatpush1.msra.mxu0 0.0
        %1464 = vmatprep.subr.mxu0 0.0
        %1465 = vmatpush1.msra.mxu0 0.0
        %1466 = vmatprep.subr.mxu0 0.0
        %1467 = vmatpush1.msra.mxu0 0.0
        %1468 = vmatprep.subr.mxu0 0.0
        %1469 = vmatpush1.msra.mxu0 0.0
        %1470 = vmatprep.subr.mxu0 0.0
        %1471 = vmatpush1.msra.mxu0 0.0
        %1472 = vmatprep.subr.mxu0 0.0
        %1473 = vmatpush1.msra.mxu0 0.0
        %1474 = vmatprep.subr.mxu0 0.0
        %1475 = vmatpush1.msra.mxu0 0.0
        %1476 = vmatprep.subr.mxu0 0.0
        %1477 = vmatpush1.msra.mxu0 0.0
        %1478 = vmatprep.subr.mxu0 0.0
        %1479 = vmatpush1.msra.mxu0 0.0
        %1480 = vmatprep.subr.mxu0 0.0
        %1481 = vmatpush1.msra.mxu0 0.0
        %1482 = vmatprep.subr.mxu0 0.0
        %1483 = vmatpush1.msra.mxu0 0.0
        %1484 = vmatprep.subr.mxu0 0.0
        %1485 = vmatpush1.msra.mxu0 0.0
        %1486 = vmatprep.subr.mxu0 0.0
        %1487 = vmatpush1.msra.mxu0 0.0
        %1488 = vmatprep.subr.mxu0 0.0
        %1489 = vmatpush1.msra.mxu0 0.0
        %1490 = vmatprep.subr.mxu0 0.0
        %1491 = vmatpush1.msra.mxu0 0.0
        %1492 = vmatprep.subr.mxu0 0.0
        %1493 = vmatpush1.msra.mxu0 0.0
        %1494 = vmatprep.subr.mxu0 0.0
        %1495 = vmatpush1.msra.mxu0 0.0
        %1496 = vmatprep.subr.mxu0 0.0
        %1497 = vmatpush1.msra.mxu0 0.0
        %1498 = vmatprep.subr.mxu0 0.0
        %1499 = vmatpush1.msra.mxu0 0.0
        %1500 = vmatprep.subr.mxu0 0.0
        %1501 = vmatpush1.msra.mxu0 0.0
        %1502 = vmatprep.subr.mxu0 0.0
        %1503 = vmatpush1.msra.mxu0 0.0
        %1504 = vmatprep.subr.mxu0 0.0
        %1505 = vmatpush1.msra.mxu0 0.0
        %1506 = vmatprep.subr.mxu0 0.0
        %1507 = vmatpush1.msra.mxu0 0.0
        %1508 = vmatprep.mubr.f32.mxu0 0.0
        %1509 = vmatmul.mubr.f32.gmra.mrb[0].mxu0 %v1442
        %v1510 = vpop.f32.mrb[0].mxu0
        %v1511 = vadd.f32 0.0, %v1510
        %v1512 = vpop.f32.mrb[0].mxu0
        %1513 = vdwg.mxu0
        %1515 = vrot.lane.b32.xlu0 %v1511, 24
        %v1516 = vpop.permute.xlu0 %1515
        %vm1518 = vcmask 261312
        %1519 = vst.msk [vmem:[#allocation2] sm:$0xff] %vm1518, %v1516
        %v1520 = vld [vmem:[#allocation2] sm:$0xff]
        %v1521 = vld [vmem:[#allocation15] sm:$0xff]
        %v1522 = vld [vmem:[#allocation15 + $0x8] sm:$0xff]
        %v1523 = vld [vmem:[#allocation15 + $0x10] sm:$0xff]
        %v1524 = vld [vmem:[#allocation15 + $0x18] sm:$0xff]
        %v1526 = vsel %vm609, %v1520, 0
        %1528 = vmatprep.subr.mxu0 0.0
        %1529 = vmatpush1.msra.mxu0 %v1521
        %1530 = vmatprep.subr.mxu0 0.0
        %1531 = vmatpush1.msra.mxu0 %v1522
        %1532 = vmatprep.subr.mxu0 0.0
        %1533 = vmatpush1.msra.mxu0 %v1523
        %1534 = vmatprep.subr.mxu0 0.0
        %1535 = vmatpush1.msra.mxu0 %v1524
        %1536 = vmatprep.subr.mxu0 0.0
        %1537 = vmatpush1.msra.mxu0 0.0
        %1538 = vmatprep.subr.mxu0 0.0
        %1539 = vmatpush1.msra.mxu0 0.0
        %1540 = vmatprep.subr.mxu0 0.0
        %1541 = vmatpush1.msra.mxu0 0.0
        %1542 = vmatprep.subr.mxu0 0.0
        %1543 = vmatpush1.msra.mxu0 0.0
        %1544 = vmatprep.subr.mxu0 0.0
        %1545 = vmatpush1.msra.mxu0 0.0
        %1546 = vmatprep.subr.mxu0 0.0
        %1547 = vmatpush1.msra.mxu0 0.0
        %1548 = vmatprep.subr.mxu0 0.0
        %1549 = vmatpush1.msra.mxu0 0.0
        %1550 = vmatprep.subr.mxu0 0.0
        %1551 = vmatpush1.msra.mxu0 0.0
        %1552 = vmatprep.subr.mxu0 0.0
        %1553 = vmatpush1.msra.mxu0 0.0
        %1554 = vmatprep.subr.mxu0 0.0
        %1555 = vmatpush1.msra.mxu0 0.0
        %1556 = vmatprep.subr.mxu0 0.0
        %1557 = vmatpush1.msra.mxu0 0.0
        %1558 = vmatprep.subr.mxu0 0.0
        %1559 = vmatpush1.msra.mxu0 0.0
        %1560 = vmatprep.subr.mxu0 0.0
        %1561 = vmatpush1.msra.mxu0 0.0
        %1562 = vmatprep.subr.mxu0 0.0
        %1563 = vmatpush1.msra.mxu0 0.0
        %1564 = vmatprep.subr.mxu0 0.0
        %1565 = vmatpush1.msra.mxu0 0.0
        %1566 = vmatprep.subr.mxu0 0.0
        %1567 = vmatpush1.msra.mxu0 0.0
        %1568 = vmatprep.subr.mxu0 0.0
        %1569 = vmatpush1.msra.mxu0 0.0
        %1570 = vmatprep.subr.mxu0 0.0
        %1571 = vmatpush1.msra.mxu0 0.0
        %1572 = vmatprep.subr.mxu0 0.0
        %1573 = vmatpush1.msra.mxu0 0.0
        %1574 = vmatprep.subr.mxu0 0.0
        %1575 = vmatpush1.msra.mxu0 0.0
        %1576 = vmatprep.subr.mxu0 0.0
        %1577 = vmatpush1.msra.mxu0 0.0
        %1578 = vmatprep.subr.mxu0 0.0
        %1579 = vmatpush1.msra.mxu0 0.0
        %1580 = vmatprep.subr.mxu0 0.0
        %1581 = vmatpush1.msra.mxu0 0.0
        %1582 = vmatprep.subr.mxu0 0.0
        %1583 = vmatpush1.msra.mxu0 0.0
        %1584 = vmatprep.subr.mxu0 0.0
        %1585 = vmatpush1.msra.mxu0 0.0
        %1586 = vmatprep.subr.mxu0 0.0
        %1587 = vmatpush1.msra.mxu0 0.0
        %1588 = vmatprep.subr.mxu0 0.0
        %1589 = vmatpush1.msra.mxu0 0.0
        %1590 = vmatprep.subr.mxu0 0.0
        %1591 = vmatpush1.msra.mxu0 0.0
        %1592 = vmatprep.mubr.f32.mxu0 0.0
        %1593 = vmatmul.mubr.f32.gmra.mrb[0].mxu0 %v1526
        %v1594 = vpop.f32.mrb[0].mxu0
        %v1595 = vadd.f32 %v601, %v1594
        %v1596 = vpop.f32.mrb[0].mxu0
        %1597 = vdwg.mxu0
        %v1598 = vsel %vm609, %v1595, 0.0
        %1599 = vadd.xlane.f32.xlu0 %v1598
        %v1600 = vpop.xlane.xlu0 %1599
        %v1601 = vrcp.pop 32.0
        %v1602 = vmul.f32 %v1600, %v1601
        %v1603 = vsub.f32 %v1595, %v1602
        %v1604 = vmul.f32 %v1603, %v1603
        %v1605 = vsel %vm609, %v1604, 0.0
        %1606 = vadd.xlane.f32.xlu0 %v1605
        %v1607 = vpop.xlane.xlu0 %1606
        %v1608 = vmul.f32 %v1607, %v1601
        %v1609 = vadd.f32 %v1608, 1e-05
        %v1610 = vrsqrt.pop %v1609
        %v1611 = vmul.f32 %v1603, %v1610
        %v1612 = vld [vmem:[%s8] sm:$0x1]
        %v1614 = vlaneseq
        %v1615 = vshrl.u32 %v1614, 7
        %v1616 = vsub.s32 0, %v1615
        %v1617 = vrot.slane %v1612, %v1616
        %v1619 = vmul.f32 %v1611, %v1617
        %v1620 = vld [vmem:[%s9] sm:$0x1]
        %v1622 = vlaneseq
        %v1623 = vshrl.u32 %v1622, 7
        %v1624 = vsub.s32 0, %v1623
        %v1625 = vrot.slane %v1620, %v1624
        %v1627 = vadd.f32 %v1619, %v1625
        %1628 = vst.msk [vmem:[%s593] sm:$0xff] %vm609, %v1627
        %s1629 = sand.u32 %s296, 1
        %s1630 = scalar_lea.sflag [#allocation5], %s1629
        %s1631 = sand.u32 %s296, 1
        %s1632 = smul.addr %s1631, 8
        %s1633 = scalar_lea.vmem [#allocation17], %s1632
        %s1634 = sand.u32 %s324, 1
        %s1635 = scalar_lea.sflag [#allocation19], %s1634
        %s1636 = sand.u32 %s324, 1
        %s1637 = smul.addr %s1636, 32
        %s1638 = scalar_lea.vmem [#allocation18], %s1637
        // Predicated region
        $region93: #{tpu_custom_call.1} parent=59 // pred_check
          %p1639 = pneg %p306
        $region94: #{tpu_custom_call.1} parent=59 // pred_check_branch
          %1641 = sbr.rel (%p1639) target = $region96
        $region95: #{tpu_custom_call.1} parent=59 // pred_region
          %s1643 = ssub.s32 128, 128
          %1644 = vsyncadd %s1630, %s1643
          %s1645 = sadd.s32 %s45, %s44
          %s1646 = smul.addr %s1645, 128
          %s1647 = scalar_lea.hbm %s10, %s1646
          %s1649 = sshll.u32 %s1633, 4
          %s1650 = int_to_ptr.vmem [resolvable:$true] %s1649
          %1652 = dma.vmem_to_hbm [thread:$0]  %s1650, 128, %s1647, %s1630
        $region96: #{tpu_custom_call.1} parent=59 // pred_fallthru
          _
        // Predicated region
        $region97: #{tpu_custom_call.1} parent=59 // pred_check
          %p1653 = pneg %p334
        $region98: #{tpu_custom_call.1} parent=59 // pred_check_branch
          %1655 = sbr.rel (%p1653) target = $region100
        $region99: #{tpu_custom_call.1} parent=59 // pred_region
          %s1657 = ssub.s32 512, 512
          %1658 = vsyncadd %s1635, %s1657
          %s1659 = smul.addr %s44, 4
          %s1660 = sadd.s32 %s45, %s1659
          %s1661 = smul.addr %s1660, 128
          %s1662 = scalar_lea.hbm %s11, %s1661
          %s1663 = sshll.u32 %s1638, 4
          %s1664 = int_to_ptr.vmem [resolvable:$true] %s1663
          %1669 = dma.vmem_to_hbm [thread:$0]  %s1664, 512, %s1662, %s1635, 128, 128, 8
        $region100: #{tpu_custom_call.1} parent=59 // pred_fallthru
          _
      $region60: #{tpu_custom_call.1} parent=5 // pred_fallthru
        _
      %p1670 = scmp.le.s32.totalorder 2, %s35
      // Predicated region
      $region101: #{tpu_custom_call.1} parent=5 // pred_check
        %p1671 = pneg %p1670
      $region102: #{tpu_custom_call.1} parent=5 // pred_check_branch
        %1673 = sbr.rel (%p1671) target = $region104
      $region103: #{tpu_custom_call.1} parent=5 // pred_region
        %s1674 = ssub.s32 %s35, 2
        // Predicated region
        $region105: #{tpu_custom_call.1} parent=103 // pred_check
          %p1675 = pneg %p312
        $region106: #{tpu_custom_call.1} parent=103 // pred_check_branch
          %1677 = sbr.rel (%p1675) target = $region108
        $region107: #{tpu_custom_call.1} parent=103 // pred_region
          %s1678 = sand.u32 %s297, 1
          %s1679 = scalar_lea.sflag [#allocation5], %s1678
          %s1680 = sand.u32 %s297, 1
          %s1681 = smul.addr %s1680, 8
          %s1682 = scalar_lea.vmem [#allocation17], %s1681
          %1683 = dma.done %s1679, 128
        $region108: #{tpu_custom_call.1} parent=103 // pred_fallthru
          _
        // Predicated region
        $region109: #{tpu_custom_call.1} parent=103 // pred_check
          %p1684 = pneg %p340
        $region110: #{tpu_custom_call.1} parent=103 // pred_check_branch
          %1686 = sbr.rel (%p1684) target = $region112
        $region111: #{tpu_custom_call.1} parent=103 // pred_region
          %s1687 = sand.u32 %s325, 1
          %s1688 = scalar_lea.sflag [#allocation19], %s1687
          %s1689 = sand.u32 %s325, 1
          %s1690 = smul.addr %s1689, 32
          %s1691 = scalar_lea.vmem [#allocation18], %s1690
          %1692 = dma.done %s1688, 512
        $region112: #{tpu_custom_call.1} parent=103 // pred_fallthru
          _
      $region104: #{tpu_custom_call.1} parent=5 // pred_fallthru
        _
    $region6: #{tpu_custom_call.1} parent=1 // loop_footer
      %s39 = sadd.s32 1, %s35
    $region7: #{tpu_custom_call.1} parent=1 // loop_footer_branch
      %34 = sbr.rel target = $region3
    $region8: #{tpu_custom_call.1} parent=1 // loop_exit
      _
    %1693 = vsyncpa [#allocation4], 1
    %s1694 = scalar_lea.sflag [#allocation4], 1
    %1695 = vsyncpa %s1694, 1
    %1696 = vsyncpa [#allocation7], 1
    %s1697 = scalar_lea.sflag [#allocation7], 1
    %1698 = vsyncpa %s1697, 1
    %1699 = vsyncpa [#allocation10], 1
    %s1700 = scalar_lea.sflag [#allocation10], 1
    %1701 = vsyncpa %s1700, 1
    %1702 = vsyncpa [#allocation13], 1
    %1703 = vsyncpa [#allocation16], 1
    %1704 = vsyncpa [#allocation5], 1
    %s1705 = scalar_lea.sflag [#allocation5], 1
    %1706 = vsyncpa %s1705, 1
    %1707 = vsyncpa [#allocation19], 1
    %s1708 = scalar_lea.sflag [#allocation19], 1
    %1709 = vsyncpa %s1708, 1

</llo_original>
